<compile_context>
chip_gen: v7x
topology: tpu7x:2x2x1
jax: 0.10.0
libtpu: 0.0.40
codegen_flags: <defaults>
</compile_context>

<pallas_src>
import functools

import jax
import jax.numpy as jnp
import numpy as np
from jax.experimental import pallas as pl
from jax.experimental.pallas import tpu as pltpu

_COMPUTE_DTYPE = jnp.bfloat16  # MXU input dtype; accumulation stays f32.


def _round_up(x, m):
    return (x + m - 1) // m * m


# ----------------------------------------------------------------------------
# Fused kernel: 3x3 conv (pad=1) + bias + ReLU + concatenated 1x1 heads.
# One grid step = one TH-row band of one image.
# ----------------------------------------------------------------------------
def _fused_pred_kernel(top_ref, mid_ref, bot_ref, wc_ref, bc_ref,
                       wh_ref, bh_ref, out_ref, shif_ref):
    # top_ref : (1, 1,  W+2, Cin)   row above the band (zero-masked at r == 0)
    # mid_ref : (1, TH, W+2, Cin)   the band
    # bot_ref : (1, 1,  W+2, Cin)   row below the band (zero-masked at last r)
    # wc_ref  : (3, 3*Cin, Chid)    conv weight, ky-major; K ordered (kx, cin)
    # bc_ref  : (1, Chid)           conv bias, f32
    # wh_ref  : (Chid, Cout_pad)    concatenated + lane-padded head weight
    # bh_ref  : (1, Cout_pad)       concatenated head bias, f32
    # out_ref : (1, TH, W, Cout_pad)
    # shif_ref: VMEM scratch (TH+2, W, 3*Cin) — kx-grouped shifted window
    r = pl.program_id(1)
    n_rb = pl.num_programs(1)

    TH = mid_ref.shape[1]
    Wp = mid_ref.shape[2]
    W = Wp - 2
    Cin = mid_ref.shape[3]
    Cout = out_ref.shape[3]
    M = TH * W
    dt = shif_ref.dtype

    # Halo rows: rows outside the image are the conv's zero padding.  The zero
    # masks below MUST stay matched with the clamped top/bot index_maps in the
    # wrapper (they discard the clamped duplicate rows).
    zero_row = jnp.zeros((Wp, Cin), dt)
    top = jnp.where(r == 0, zero_row, top_ref[0, 0].astype(dt))
    bot = jnp.where(r == n_rb - 1, zero_row, bot_ref[0, 0].astype(dt))
    mid = mid_ref[0].astype(dt)                              # (TH, Wp, Cin)

    # kx-grouped shifted window: shif[y, x, kx*Cin:(kx+1)*Cin] = win[y, x+kx].
    # Built with three full-lane-width stores (lane-concat of the 3 kx shifts)
    # instead of nine unaligned slice materializations; no full mid-band copy.
    def kx_group(v):  # (..., Wp, Cin) -> (..., W, 3*Cin)
        return jnp.concatenate(
            [v[..., 0:W, :], v[..., 1:W + 1, :], v[..., 2:W + 2, :]], axis=-1)

    shif_ref[0] = kx_group(top)                              # (W, 3*Cin)
    shif_ref[1:TH + 1] = kx_group(mid)                       # (TH, W, 3*Cin)
    shif_ref[TH + 1] = kx_group(bot)

    # 3x3 conv as three grouped-K matmuls (K = 3*Cin).  The ky slices are
    # leading-dim slices of shif_ref (cheap) and the reshapes are contiguous;
    # partial sums are combined as values (no scratch-accumulator round trips).
    xs0 = shif_ref[0:TH].reshape(M, 3 * Cin)
    xs1 = shif_ref[1:TH + 1].reshape(M, 3 * Cin)
    xs2 = shif_ref[2:TH + 2].reshape(M, 3 * Cin)
    acc = (jnp.dot(xs0, wc_ref[0], preferred_element_type=jnp.float32)
           + jnp.dot(xs1, wc_ref[1], preferred_element_type=jnp.float32)
           + jnp.dot(xs2, wc_ref[2], preferred_element_type=jnp.float32))

    # Bias + ReLU epilogue in f32 while the band is still in VMEM.
    feat = jnp.maximum(acc + bc_ref[0][None, :], 0.0)

    # Fused heads: one lane-dense (K=Chid, N=Cout_pad>=128) matmul instead of
    # three narrow ones; heat/emb/off are sliced out in the wrapper.
    out = jnp.dot(feat.astype(wh_ref.dtype), wh_ref[...],
                  preferred_element_type=jnp.float32) + bh_ref[0][None, :]
    out_ref[0] = out.reshape(TH, W, Cout).astype(out_ref.dtype)


# ----------------------------------------------------------------------------
# Module wrapper (NCHW in / NCHW out, matching PyTorch conventions).
# ----------------------------------------------------------------------------
@functools.partial(jax.jit, static_argnames=("row_tile", "out_dtype"))
def prediction_module(x_nchw, params, *, row_tile=8, out_dtype=jnp.float32):
    # NOTE: the NCHW<->NHWC transposes, the W-halo pad and the output slices
    # are wrapper-level XLA HBM passes; keep NHWC end-to-end in the
    # surrounding model to drop them if possible.
    x = jnp.transpose(x_nchw, (0, 2, 3, 1)).astype(_COMPUTE_DTYPE)  # NHWC
    N, H, W, Cin = x.shape

    TH = min(row_tile, H)
    # TODO(synk): partial row tiles are not masked; H must divide evenly.
    assert H % TH == 0, "H must be a multiple of row_tile"
    n_rb = H // TH
    Wp = W + 2

    # 1-px halo along W only (tiny).  The H halo is fetched via the top/bottom
    # row specs (clamped index_map + in-kernel zero mask), so no H-padded copy
    # of the activation is materialized.
    x_wpad = jnp.pad(x, ((0, 0), (0, 0), (1, 1), (0, 0)))

    # Conv weight regrouped for the grouped-K matmuls:
    # (3, 3, Cin, Chid) -> (ky, kx*Cin, Chid), matching the kx-major lane
    # ordering of the in-kernel shifted window.
    wc = params["w_conv"].astype(_COMPUTE_DTYPE).reshape(3, 3 * Cin, -1)
    bc = params["b_conv"].astype(jnp.float32)          # (1, Chid)
    Chid = wc.shape[2]

    nc = params["w_heat"].shape[1]
    c_total = nc + 1 + 2
    # Lane-dense head width: 128 for small class counts, multiples of 256
    # beyond that (v6e/v7x MXU is 256 wide).
    c_pad = 128 if c_total <= 128 else _round_up(c_total, 256)

    w_all = jnp.concatenate(
        [params["w_heat"], params["w_emb"], params["w_off"]], axis=1)
    b_all = jnp.concatenate(
        [params["b_heat"], params["b_emb"], params["b_off"]], axis=1)
    w_all = jnp.pad(w_all, ((0, 0), (0, c_pad - c_total))).astype(_COMPUTE_DTYPE)
    b_all = jnp.pad(b_all, ((0, 0), (0, c_pad - c_total))).astype(jnp.float32)

    out = pl.pallas_call(
        _fused_pred_kernel,
        out_shape=jax.ShapeDtypeStruct((N, H, W, c_pad), out_dtype),
        grid=(N, n_rb),
        in_specs=[
            # halo row above the band (clamped; zero-masked in-kernel at r==0)
            pl.BlockSpec((1, 1, Wp, Cin),
                         lambda n, r: (n, jnp.maximum(r * TH - 1, 0), 0, 0)),
            # the TH-row band
            pl.BlockSpec((1, TH, Wp, Cin), lambda n, r: (n, r, 0, 0)),
            # halo row below the band (clamped; zero-masked at the last r)
            pl.BlockSpec((1, 1, Wp, Cin),
                         lambda n, r: (n, jnp.minimum((r + 1) * TH, H - 1), 0, 0)),
            pl.BlockSpec((3, 3 * Cin, Chid), lambda n, r: (0, 0, 0)),
            pl.BlockSpec((1, Chid), lambda n, r: (0, 0)),
            pl.BlockSpec((Chid, c_pad), lambda n, r: (0, 0)),
            pl.BlockSpec((1, c_pad), lambda n, r: (0, 0)),
        ],
        out_specs=pl.BlockSpec((1, TH, W, c_pad), lambda n, r: (n, r, 0, 0)),
        scratch_shapes=[
            # kx-grouped shifted window (band + 1-row halo)
            pltpu.VMEM((TH + 2, W, 3 * Cin), _COMPUTE_DTYPE),
        ],
        compiler_params=pltpu.CompilerParams(
            # Both axes independent -> megacore can split them (v7x: 2 TCs);
            # keep N * n_rb >= 2 so neither core idles.
            dimension_semantics=("parallel", "parallel"),
            # Per-generation tile sizing: sweep row_tile up to ~32-64 on
            # v5e/v6e (128 MiB VMEM), cap at ~16-32 on v7x (64 MiB).  48 MiB
            # scoped limit leaves headroom on v7x while allowing large bands
            # on v5e/v6e.
            vmem_limit_bytes=48 * 1024 * 1024,
        ),
    )(x_wpad, x_wpad, x_wpad, wc, bc, w_all, b_all)

    heat = out[..., :nc]
    emb = out[..., nc:nc + 1]
    off = out[..., nc + 1:nc + 3]

    def to_nchw(y):
        return jnp.transpose(y, (0, 3, 1, 2))

    return to_nchw(heat), to_nchw(emb), to_nchw(off)


# ----------------------------------------------------------------------------
# Parameter init (canonical CornerNet head: -2.19 heatmap bias).
# ----------------------------------------------------------------------------
def init_params(key, cin, chid, num_classes):
    ks = jax.random.split(key, 4)
    scale3 = 1.0 / jnp.sqrt(3 * 3 * cin)
    scale1 = 1.0 / jnp.sqrt(chid)
    return {
        # stored as (kh, kw, Cin, Cout) for NHWC convolution
        "w_conv": jax.random.normal(ks[0], (3, 3, cin, chid), jnp.float32) * scale3,
        "b_conv": jnp.zeros((1, chid), jnp.float32),
        "w_heat": jax.random.normal(ks[1], (chid, num_classes), jnp.float32) * scale1,
        "b_heat": jnp.full((1, num_classes), -2.19, jnp.float32),
        "w_emb": jax.random.normal(ks[2], (chid, 1), jnp.float32) * scale1,
        "b_emb": jnp.zeros((1, 1), jnp.float32),
        "w_off": jax.random.normal(ks[3], (chid, 2), jnp.float32) * scale1,
        "b_off": jnp.zeros((1, 2), jnp.float32),
    }


# Pure-JAX reference (same bf16 quantization points as the kernel).
def _reference(x_nchw, params):
    x = jnp.transpose(x_nchw, (0, 2, 3, 1)).astype(_COMPUTE_DTYPE)
    wc = params["w_conv"].astype(_COMPUTE_DTYPE)
    feat = jax.lax.conv_general_dilated(
        x, wc, window_strides=(1, 1), padding=((1, 1), (1, 1)),
        dimension_numbers=("NHWC", "HWIO", "NHWC"),
        preferred_element_type=jnp.float32)
    feat = jnp.maximum(feat + params["b_conv"][0], 0.0)
    featb = feat.astype(_COMPUTE_DTYPE)

    def head(w, b):
        y = jnp.einsum("nhwc,cd->nhwd", featb, w.astype(_COMPUTE_DTYPE),
                       preferred_element_type=jnp.float32) + b[0]
        return jnp.transpose(y, (0, 3, 1, 2))

    return (head(params["w_heat"], params["b_heat"]),
            head(params["w_emb"], params["b_emb"]),
            head(params["w_off"], params["b_off"]))


if __name__ == "__main__":
    key = jax.random.PRNGKey(0)
    k_x, k_p = jax.random.split(key)

    N, Cin, H, W = 2, 4, 16, 16
    Chid, num_classes = 8, 4

    x = jax.random.normal(k_x, (N, Cin, H, W), jnp.float32)   # NCHW like torch
    params = init_params(k_p, Cin, Chid, num_classes)

    heat, emb, off = prediction_module(x, params, row_tile=8)
    jax.block_until_ready((heat, emb, off))

    assert heat.shape == (N, num_classes, H, W)
    assert emb.shape == (N, 1, H, W)
    assert off.shape == (N, 2, H, W)

    r_heat, r_emb, r_off = _reference(x, params)
    np.testing.assert_allclose(np.asarray(heat), np.asarray(r_heat),
                               rtol=2e-2, atol=2e-2)
    np.testing.assert_allclose(np.asarray(emb), np.asarray(r_emb),
                               rtol=2e-2, atol=2e-2)
    np.testing.assert_allclose(np.asarray(off), np.asarray(r_off),
                               rtol=2e-2, atol=2e-2)

    print("KERNEL_OK")
</pallas_src>

<mosaic_0001>
module attributes {stable_mosaic.version = 11 : i64} {
  func.func @_fused_pred_kernel(%arg0: i32, %arg1: i32, %arg2: memref<1x1x18x4xbf16, #tpu.memory_space<vmem>>, %arg3: memref<1x8x18x4xbf16, #tpu.memory_space<vmem>>, %arg4: memref<1x1x18x4xbf16, #tpu.memory_space<vmem>>, %arg5: memref<3x12x8xbf16, #tpu.memory_space<vmem>>, %arg6: memref<1x8xf32, #tpu.memory_space<vmem>>, %arg7: memref<8x128xbf16, #tpu.memory_space<vmem>>, %arg8: memref<1x128xf32, #tpu.memory_space<vmem>>, %arg9: memref<1x8x16x128xf32, #tpu.memory_space<vmem>>, %arg10: memref<10x16x12xbf16, #tpu.memory_space<vmem>>) attributes {dimension_semantics = [#tpu.dimension_semantics<parallel>, #tpu.dimension_semantics<parallel>], iteration_bounds = array<i64: 2, 2>, scalar_prefetch = 0 : i64, scratch_operands = 1 : i64, tpu.core_type = #tpu.core_type<tc>, window_params = [{transform_indices = @transform_0, window_bounds = array<i64: 1, 1, 18, 4>}, {transform_indices = @transform_1, window_bounds = array<i64: 1, 8, 18, 4>}, {transform_indices = @transform_2, window_bounds = array<i64: 1, 1, 18, 4>}, {pipeline_mode = #tpu.pipeline_mode<synchronous>, transform_indices = @transform_3, window_bounds = array<i64: 3, 12, 8>}, {pipeline_mode = #tpu.pipeline_mode<synchronous>, transform_indices = @transform_4, window_bounds = array<i64: 1, 8>}, {pipeline_mode = #tpu.pipeline_mode<synchronous>, transform_indices = @transform_5, window_bounds = array<i64: 8, 128>}, {pipeline_mode = #tpu.pipeline_mode<synchronous>, transform_indices = @transform_6, window_bounds = array<i64: 1, 128>}, {transform_indices = @transform_7, window_bounds = array<i64: 1, 8, 16, 128>}]} {
    %cst = arith.constant 0.000000e+00 : bf16
    %0 = vector.broadcast %cst : bf16 to vector<18x4xbf16>
    %c0_i32 = arith.constant 0 : i32
    %1 = arith.cmpi eq, %arg1, %c0_i32 : i32
    %c0 = arith.constant 0 : index
    %c0_0 = arith.constant 0 : index
    %c0_1 = arith.constant 0 : index
    %c0_2 = arith.constant 0 : index
    %2 = vector.load %arg2[%c0, %c0_0, %c0_1, %c0_2] : memref<1x1x18x4xbf16, #tpu.memory_space<vmem>>, vector<1x1x18x4xbf16>
    %3 = vector.shape_cast %2 : vector<1x1x18x4xbf16> to vector<18x4xbf16>
    %4 = arith.select %1, %0, %3 : vector<18x4xbf16>
    %c1_i32 = arith.constant 1 : i32
    %5 = arith.cmpi eq, %arg1, %c1_i32 : i32
    %c0_3 = arith.constant 0 : index
    %c0_4 = arith.constant 0 : index
    %c0_5 = arith.constant 0 : index
    %c0_6 = arith.constant 0 : index
    %6 = vector.load %arg4[%c0_3, %c0_4, %c0_5, %c0_6] : memref<1x1x18x4xbf16, #tpu.memory_space<vmem>>, vector<1x1x18x4xbf16>
    %7 = vector.shape_cast %6 : vector<1x1x18x4xbf16> to vector<18x4xbf16>
    %8 = arith.select %5, %0, %7 : vector<18x4xbf16>
    %c0_7 = arith.constant 0 : index
    %c0_8 = arith.constant 0 : index
    %c0_9 = arith.constant 0 : index
    %c0_10 = arith.constant 0 : index
    %9 = vector.load %arg3[%c0_7, %c0_8, %c0_9, %c0_10] : memref<1x8x18x4xbf16, #tpu.memory_space<vmem>>, vector<1x8x18x4xbf16>
    %10 = vector.shape_cast %9 : vector<1x8x18x4xbf16> to vector<8x18x4xbf16>
    %11 = vector.extract_strided_slice %4 {offsets = [0, 0], sizes = [16, 4], strides = [1, 1]} : vector<18x4xbf16> to vector<16x4xbf16>
    %12 = vector.extract_strided_slice %4 {offsets = [1, 0], sizes = [16, 4], strides = [1, 1]} : vector<18x4xbf16> to vector<16x4xbf16>
    %13 = vector.extract_strided_slice %4 {offsets = [2, 0], sizes = [16, 4], strides = [1, 1]} : vector<18x4xbf16> to vector<16x4xbf16>
    %14 = tpu.concatenate %11, %12, %13 in 1 : vector<16x4xbf16>, vector<16x4xbf16>, vector<16x4xbf16> -> vector<16x12xbf16>
    %c0_11 = arith.constant 0 : index
    %c0_12 = arith.constant 0 : index
    %c0_13 = arith.constant 0 : index
    %15 = vector.load %arg10[%c0_11, %c0_12, %c0_13] : memref<10x16x12xbf16, #tpu.memory_space<vmem>>, vector<1x16x12xbf16>
    %16 = vector.shape_cast %15 : vector<1x16x12xbf16> to vector<16x12xbf16>
    %17 = vector.shape_cast %14 : vector<16x12xbf16> to vector<1x16x12xbf16>
    tpu.vector_store %arg10[%c0_11, %c0_12, %c0_13], %17 {strides = array<i32>} : memref<10x16x12xbf16, #tpu.memory_space<vmem>>, vector<1x16x12xbf16>,
    %18 = vector.extract_strided_slice %10 {offsets = [0, 0, 0], sizes = [8, 16, 4], strides = [1, 1, 1]} : vector<8x18x4xbf16> to vector<8x16x4xbf16>
    %19 = vector.extract_strided_slice %10 {offsets = [0, 1, 0], sizes = [8, 16, 4], strides = [1, 1, 1]} : vector<8x18x4xbf16> to vector<8x16x4xbf16>
    %20 = vector.extract_strided_slice %10 {offsets = [0, 2, 0], sizes = [8, 16, 4], strides = [1, 1, 1]} : vector<8x18x4xbf16> to vector<8x16x4xbf16>
    %21 = tpu.concatenate %18, %19, %20 in 2 : vector<8x16x4xbf16>, vector<8x16x4xbf16>, vector<8x16x4xbf16> -> vector<8x16x12xbf16>
    %c1 = arith.constant 1 : index
    %c0_14 = arith.constant 0 : index
    %c0_15 = arith.constant 0 : index
    %22 = vector.load %arg10[%c1, %c0_14, %c0_15] : memref<10x16x12xbf16, #tpu.memory_space<vmem>>, vector<8x16x12xbf16>
    tpu.vector_store %arg10[%c1, %c0_14, %c0_15], %21 {strides = array<i32>} : memref<10x16x12xbf16, #tpu.memory_space<vmem>>, vector<8x16x12xbf16>,
    %23 = vector.extract_strided_slice %8 {offsets = [0, 0], sizes = [16, 4], strides = [1, 1]} : vector<18x4xbf16> to vector<16x4xbf16>
    %24 = vector.extract_strided_slice %8 {offsets = [1, 0], sizes = [16, 4], strides = [1, 1]} : vector<18x4xbf16> to vector<16x4xbf16>
    %25 = vector.extract_strided_slice %8 {offsets = [2, 0], sizes = [16, 4], strides = [1, 1]} : vector<18x4xbf16> to vector<16x4xbf16>
    %26 = tpu.concatenate %23, %24, %25 in 1 : vector<16x4xbf16>, vector<16x4xbf16>, vector<16x4xbf16> -> vector<16x12xbf16>
    %c9 = arith.constant 9 : index
    %c0_16 = arith.constant 0 : index
    %c0_17 = arith.constant 0 : index
    %27 = vector.load %arg10[%c9, %c0_16, %c0_17] : memref<10x16x12xbf16, #tpu.memory_space<vmem>>, vector<1x16x12xbf16>
    %28 = vector.shape_cast %27 : vector<1x16x12xbf16> to vector<16x12xbf16>
    %29 = vector.shape_cast %26 : vector<16x12xbf16> to vector<1x16x12xbf16>
    tpu.vector_store %arg10[%c9, %c0_16, %c0_17], %29 {strides = array<i32>} : memref<10x16x12xbf16, #tpu.memory_space<vmem>>, vector<1x16x12xbf16>,
    %c0_18 = arith.constant 0 : index
    %c0_19 = arith.constant 0 : index
    %c0_20 = arith.constant 0 : index
    %30 = vector.load %arg10[%c0_18, %c0_19, %c0_20] : memref<10x16x12xbf16, #tpu.memory_space<vmem>>, vector<8x16x12xbf16>
    %31 = vector.shape_cast %30 : vector<8x16x12xbf16> to vector<128x12xbf16>
    %c1_21 = arith.constant 1 : index
    %c0_22 = arith.constant 0 : index
    %c0_23 = arith.constant 0 : index
    %32 = vector.load %arg10[%c1_21, %c0_22, %c0_23] : memref<10x16x12xbf16, #tpu.memory_space<vmem>>, vector<8x16x12xbf16>
    %33 = vector.shape_cast %32 : vector<8x16x12xbf16> to vector<128x12xbf16>
    %c2 = arith.constant 2 : index
    %c0_24 = arith.constant 0 : index
    %c0_25 = arith.constant 0 : index
    %34 = vector.load %arg10[%c2, %c0_24, %c0_25] : memref<10x16x12xbf16, #tpu.memory_space<vmem>>, vector<8x16x12xbf16>
    %35 = vector.shape_cast %34 : vector<8x16x12xbf16> to vector<128x12xbf16>
    %c0_26 = arith.constant 0 : index
    %c0_27 = arith.constant 0 : index
    %c0_28 = arith.constant 0 : index
    %36 = vector.load %arg5[%c0_26, %c0_27, %c0_28] : memref<3x12x8xbf16, #tpu.memory_space<vmem>>, vector<1x12x8xbf16>
    %37 = vector.shape_cast %36 : vector<1x12x8xbf16> to vector<12x8xbf16>
    %cst_29 = arith.constant dense<0.000000e+00> : vector<128x8xf32>
    %38 = tpu.matmul %31, %37, %cst_29 {dimension_numbers = #tpu.dot_dimension_numbers<[1], [0], [0], [1], [0, 0, 1, 1], [], []>} : vector<128x12xbf16>, vector<12x8xbf16>, vector<128x8xf32> -> vector<128x8xf32>
    %c1_30 = arith.constant 1 : index
    %c0_31 = arith.constant 0 : index
    %c0_32 = arith.constant 0 : index
    %39 = vector.load %arg5[%c1_30, %c0_31, %c0_32] : memref<3x12x8xbf16, #tpu.memory_space<vmem>>, vector<1x12x8xbf16>
    %40 = vector.shape_cast %39 : vector<1x12x8xbf16> to vector<12x8xbf16>
    %cst_33 = arith.constant dense<0.000000e+00> : vector<128x8xf32>
    %41 = tpu.matmul %33, %40, %cst_33 {dimension_numbers = #tpu.dot_dimension_numbers<[1], [0], [0], [1], [0, 0, 1, 1], [], []>} : vector<128x12xbf16>, vector<12x8xbf16>, vector<128x8xf32> -> vector<128x8xf32>
    %42 = arith.addf %38, %41 : vector<128x8xf32>
    %c2_34 = arith.constant 2 : index
    %c0_35 = arith.constant 0 : index
    %c0_36 = arith.constant 0 : index
    %43 = vector.load %arg5[%c2_34, %c0_35, %c0_36] : memref<3x12x8xbf16, #tpu.memory_space<vmem>>, vector<1x12x8xbf16>
    %44 = vector.shape_cast %43 : vector<1x12x8xbf16> to vector<12x8xbf16>
    %cst_37 = arith.constant dense<0.000000e+00> : vector<128x8xf32>
    %45 = tpu.matmul %35, %44, %cst_37 {dimension_numbers = #tpu.dot_dimension_numbers<[1], [0], [0], [1], [0, 0, 1, 1], [], []>} : vector<128x12xbf16>, vector<12x8xbf16>, vector<128x8xf32> -> vector<128x8xf32>
    %46 = arith.addf %42, %45 : vector<128x8xf32>
    %c0_38 = arith.constant 0 : index
    %c0_39 = arith.constant 0 : index
    %47 = vector.load %arg6[%c0_38, %c0_39] : memref<1x8xf32, #tpu.memory_space<vmem>>, vector<1x8xf32>
    %48 = vector.shape_cast %47 : vector<1x8xf32> to vector<8xf32>
    %49 = vector.shape_cast %48 : vector<8xf32> to vector<1x8xf32>
    %50 = vector.broadcast %49 : vector<1x8xf32> to vector<128x8xf32>
    %51 = arith.addf %46, %50 : vector<128x8xf32>
    %cst_40 = arith.constant 0.000000e+00 : f32
    %52 = vector.broadcast %cst_40 : f32 to vector<128x8xf32>
    %53 = arith.maximumf %51, %52 : vector<128x8xf32>
    %54 = arith.truncf %53 : vector<128x8xf32> to vector<128x8xbf16>
    %c0_41 = arith.constant 0 : index
    %c0_42 = arith.constant 0 : index
    %55 = vector.load %arg7[%c0_41, %c0_42] : memref<8x128xbf16, #tpu.memory_space<vmem>>, vector<8x128xbf16>
    %cst_43 = arith.constant dense<0.000000e+00> : vector<128x128xf32>
    %56 = tpu.matmul %54, %55, %cst_43 {dimension_numbers = #tpu.dot_dimension_numbers<[1], [0], [0], [1], [0, 0, 1, 1], [], []>} : vector<128x8xbf16>, vector<8x128xbf16>, vector<128x128xf32> -> vector<128x128xf32>
    %c0_44 = arith.constant 0 : index
    %c0_45 = arith.constant 0 : index
    %57 = vector.load %arg8[%c0_44, %c0_45] : memref<1x128xf32, #tpu.memory_space<vmem>>, vector<1x128xf32>
    %58 = vector.shape_cast %57 : vector<1x128xf32> to vector<128xf32>
    %59 = vector.shape_cast %58 : vector<128xf32> to vector<1x128xf32>
    %60 = vector.broadcast %59 : vector<1x128xf32> to vector<128x128xf32>
    %61 = arith.addf %56, %60 : vector<128x128xf32>
    %62 = vector.shape_cast %61 : vector<128x128xf32> to vector<8x16x128xf32>
    %c0_46 = arith.constant 0 : index
    %c0_47 = arith.constant 0 : index
    %c0_48 = arith.constant 0 : index
    %c0_49 = arith.constant 0 : index
    %63 = vector.load %arg9[%c0_46, %c0_47, %c0_48, %c0_49] : memref<1x8x16x128xf32, #tpu.memory_space<vmem>>, vector<1x8x16x128xf32>
    %64 = vector.shape_cast %63 : vector<1x8x16x128xf32> to vector<8x16x128xf32>
    %65 = vector.shape_cast %62 : vector<8x16x128xf32> to vector<1x8x16x128xf32>
    tpu.vector_store %arg9[%c0_46, %c0_47, %c0_48, %c0_49], %65 {strides = array<i32>} : memref<1x8x16x128xf32, #tpu.memory_space<vmem>>, vector<1x8x16x128xf32>,
    return
  }
  func.func @transform_0(%arg0: i32, %arg1: i32) -> (i32, i32, i32, i32) {
    %c8_i32 = arith.constant 8 : i32
    %0 = arith.muli %arg1, %c8_i32 : i32
    %c1_i32 = arith.constant 1 : i32
    %1 = arith.subi %0, %c1_i32 : i32
    %c0_i32 = arith.constant 0 : i32
    %2 = arith.maxsi %1, %c0_i32 : i32
    %c0_i32_0 = arith.constant 0 : i32
    %c0_i32_1 = arith.constant 0 : i32
    %c0_i32_2 = arith.constant 0 : i32
    return %arg0, %2, %c0_i32_0, %c0_i32_1 : i32, i32, i32, i32
  }
  func.func @transform_1(%arg0: i32, %arg1: i32) -> (i32, i32, i32, i32) {
    %c0_i32 = arith.constant 0 : i32
    %c0_i32_0 = arith.constant 0 : i32
    %c0_i32_1 = arith.constant 0 : i32
    return %arg0, %arg1, %c0_i32, %c0_i32_0 : i32, i32, i32, i32
  }
  func.func @transform_2(%arg0: i32, %arg1: i32) -> (i32, i32, i32, i32) {
    %c1_i32 = arith.constant 1 : i32
    %0 = arith.addi %arg1, %c1_i32 : i32
    %c8_i32 = arith.constant 8 : i32
    %1 = arith.muli %0, %c8_i32 : i32
    %c15_i32 = arith.constant 15 : i32
    %2 = arith.minsi %1, %c15_i32 : i32
    %c0_i32 = arith.constant 0 : i32
    %c0_i32_0 = arith.constant 0 : i32
    %c0_i32_1 = arith.constant 0 : i32
    return %arg0, %2, %c0_i32, %c0_i32_0 : i32, i32, i32, i32
  }
  func.func @transform_3(%arg0: i32, %arg1: i32) -> (i32, i32, i32) {
    %c0_i32 = arith.constant 0 : i32
    %c0_i32_0 = arith.constant 0 : i32
    %c0_i32_1 = arith.constant 0 : i32
    %c0_i32_2 = arith.constant 0 : i32
    return %c0_i32, %c0_i32_0, %c0_i32_1 : i32, i32, i32
  }
  func.func @transform_4(%arg0: i32, %arg1: i32) -> (i32, i32) {
    %c0_i32 = arith.constant 0 : i32
    %c0_i32_0 = arith.constant 0 : i32
    %c0_i32_1 = arith.constant 0 : i32
    return %c0_i32, %c0_i32_0 : i32, i32
  }
  func.func @transform_5(%arg0: i32, %arg1: i32) -> (i32, i32) {
    %c0_i32 = arith.constant 0 : i32
    %c0_i32_0 = arith.constant 0 : i32
    %c0_i32_1 = arith.constant 0 : i32
    return %c0_i32, %c0_i32_0 : i32, i32
  }
  func.func @transform_6(%arg0: i32, %arg1: i32) -> (i32, i32) {
    %c0_i32 = arith.constant 0 : i32
    %c0_i32_0 = arith.constant 0 : i32
    %c0_i32_1 = arith.constant 0 : i32
    return %c0_i32, %c0_i32_0 : i32, i32
  }
  func.func @transform_7(%arg0: i32, %arg1: i32) -> (i32, i32, i32, i32) {
    %c0_i32 = arith.constant 0 : i32
    %c0_i32_0 = arith.constant 0 : i32
    %c0_i32_1 = arith.constant 0 : i32
    return %arg0, %arg1, %c0_i32, %c0_i32_0 : i32, i32, i32, i32
  }
}

</mosaic_0001>

<llo_original>
// kernel: prediction_module.1
$region0: #{prediction_module.1}
  #allocation0 [shape = 'u32[]', space=smem, size = 0x4, offset = 0x4, fixed_abs, tag = 'smem constant byte address 0x4 - core index']
  #allocation1 [shape = 'u32[144,128]{1,0:T(1,128)}', space=vmem, size = 0x12000, scoped, tag = 'internal scratch']
  #allocation2 [shape = 'bf16[10,16,12]{2,1,0:T(16,128)(2,1)}', space=vmem, size = 0xa000, scoped, tag = 'scratch operand']
  %s0 = inlined_call_operand.vmem [shape: bf16[2,16,18,4], index: 0, kind: input, shape index: {}, may-alias: {0,1,2}]
  %s1 = inlined_call_operand.vmem [shape: bf16[2,16,18,4], index: 1, kind: input, shape index: {}, may-alias: {0,1,2}]
  %s2 = inlined_call_operand.vmem [shape: bf16[2,16,18,4], index: 2, kind: input, shape index: {}, may-alias: {0,1,2}]
  %s3 = inlined_call_operand.vmem [shape: bf16[3,12,8], index: 3, kind: input, shape index: {}]
  %s4 = inlined_call_operand.vmem [shape: f32[1,8], index: 4, kind: input, shape index: {}]
  %s5 = inlined_call_operand.vmem [shape: bf16[8,128], index: 5, kind: input, shape index: {}]
  %s6 = inlined_call_operand.vmem [shape: f32[1,128], index: 6, kind: input, shape index: {}]
  %s7 = inlined_call_operand.vmem [shape: f32[2,16,16,128], index: 7, kind: output, shape index: {}]
  %s8 = sld [smem:[#allocation0]]
  $region61: #{prediction_module.1} parent=0
    _
  %s10 = ssub.s32 1, %s8
  %s11 = scalar_select 0, %s10, %s8
  loop: start=0, step=1, limit=6
  $region2: #{prediction_module.1} parent=0 // loop_pre_header
    _
  $region3: #{prediction_module.1} parent=0 // loop_header
    %s13 = sphi 0, %s17
    %p14 = scmp.ge.s32.totalorder %s13, 6
    %s20 = sphi 0, %s32
    %s21 = sphi 0, %s28
    %s22 = sphi 0, %s20
    %s23 = sphi 0, %s21
    %s24 = sphi 0, %s22
    %s25 = sphi 0, %s23
    %s45 = sphi 0, %s47
    %s48 = sphi 0, %s45
    %s49 = sphi 0, %s48
    %s65 = sphi 0, %s49
    %s73 = sphi 0, %s75
    %s76 = sphi 0, %s73
    %s77 = sphi 0, %s76
    %s93 = sphi 0, %s77
    %s109 = sphi 0, %s111
    %s112 = sphi 0, %s109
    %s113 = sphi 0, %s112
    %s129 = sphi 0, %s113
    %s133 = sphi 0, %s133
    %s135 = sphi 0, %s133
    %s136 = sphi 0, %s135
    %s150 = sphi 0, %s136
    %s154 = sphi 0, %s154
    %s156 = sphi 0, %s154
    %s157 = sphi 0, %s156
    %s171 = sphi 0, %s157
    %s175 = sphi 0, %s175
    %s177 = sphi 0, %s175
    %s178 = sphi 0, %s177
    %s192 = sphi 0, %s178
    %s196 = sphi 0, %s196
    %s198 = sphi 0, %s196
    %s199 = sphi 0, %s198
    %s213 = sphi 0, %s199
    %s221 = sphi 0, %s223
    %s224 = sphi 0, %s221
    %s225 = sphi 0, %s224
    %s241 = sphi 0, %s225
  $region4: #{prediction_module.1} parent=0 // loop_header_branch
    %16 = sbr.rel (%p14) target = $region8
  $region5: #{prediction_module.1} parent=0 // loop_body
    %s18 = ssub.s32 %s13, 1
    %s19 = ssub.s32 %s13, 2
    %s26 = sadd.s32 1, %s21
    %p27 = scmp.ge.s32.totalorder %s26, 2
    %s28 = scalar_select %p27, 0, %s26
    %s29 = sadd.s32 1, %s20
    %s30 = scalar_select %p27, %s29, %s20
    %p31 = scmp.ge.s32.totalorder %s30, 2
    %s32 = scalar_select %p31, 0, %s30
    %s33 = smul.u32 %s21, 8
    %s34 = ssub.s32 %s33, 1
    %p35 = scmp.gt.s32.totalorder %s34, 0
    %s36 = scalar_select %p35, %s34, 0
    %s37 = smul.u32 %s28, 8
    %s38 = ssub.s32 %s37, 1
    %p39 = scmp.gt.s32.totalorder %s38, 0
    %s40 = scalar_select %p39, %s38, 0
    %s41 = ssub.s32 %s20, %s32
    %s42 = ssub.s32 %s36, %s40
    %s43 = sor.u32 %s41, %s42
    %p44 = scmp.eq.s32.totalorder %s43, 0
    %s46 = sadd.s32 %s45, 1
    %s47 = scalar_select %p44, %s45, %s46
    %p50 = pneg %p44
    %p51 = scmp.eq.s32.totalorder %s13, 3
    %p52 = por %p50, %p51
    %p53 = scmp.ne.s32.totalorder %s45, %s48
    %p54 = scmp.eq.s32.totalorder %s13, 0
    %p55 = por %p53, %p54
    %p56 = scmp.ne.s32.totalorder %s45, %s48
    %p57 = scmp.eq.s32.totalorder %s18, 3
    %p58 = por %p56, %p57
    %p59 = scmp.ne.s32.totalorder %s48, %s49
    %p60 = scmp.eq.s32.totalorder %s18, 0
    %p61 = por %p59, %p60
    %p62 = scmp.ne.s32.totalorder %s48, %s49
    %p63 = scmp.eq.s32.totalorder %s19, 3
    %p64 = por %p62, %p63
    %p66 = scmp.ne.s32.totalorder %s49, %s65
    %p67 = scmp.eq.s32.totalorder %s19, 0
    %p68 = por %p66, %p67
    %s69 = ssub.s32 %s20, %s32
    %s70 = ssub.s32 %s21, %s28
    %s71 = sor.u32 %s69, %s70
    %p72 = scmp.eq.s32.totalorder %s71, 0
    %s74 = sadd.s32 %s73, 1
    %s75 = scalar_select %p72, %s73, %s74
    %p78 = pneg %p72
    %p79 = scmp.eq.s32.totalorder %s13, 3
    %p80 = por %p78, %p79
    %p81 = scmp.ne.s32.totalorder %s73, %s76
    %p82 = scmp.eq.s32.totalorder %s13, 0
    %p83 = por %p81, %p82
    %p84 = scmp.ne.s32.totalorder %s73, %s76
    %p85 = scmp.eq.s32.totalorder %s18, 3
    %p86 = por %p84, %p85
    %p87 = scmp.ne.s32.totalorder %s76, %s77
    %p88 = scmp.eq.s32.totalorder %s18, 0
    %p89 = por %p87, %p88
    %p90 = scmp.ne.s32.totalorder %s76, %s77
    %p91 = scmp.eq.s32.totalorder %s19, 3
    %p92 = por %p90, %p91
    %p94 = scmp.ne.s32.totalorder %s77, %s93
    %p95 = scmp.eq.s32.totalorder %s19, 0
    %p96 = por %p94, %p95
    %s97 = sadd.s32 %s21, 1
    %s98 = smul.u32 %s97, 8
    %p99 = scmp.lt.s32.totalorder %s98, 15
    %s100 = scalar_select %p99, %s98, 15
    %s101 = sadd.s32 %s28, 1
    %s102 = smul.u32 %s101, 8
    %p103 = scmp.lt.s32.totalorder %s102, 15
    %s104 = scalar_select %p103, %s102, 15
    %s105 = ssub.s32 %s20, %s32
    %s106 = ssub.s32 %s100, %s104
    %s107 = sor.u32 %s105, %s106
    %p108 = scmp.eq.s32.totalorder %s107, 0
    %s110 = sadd.s32 %s109, 1
    %s111 = scalar_select %p108, %s109, %s110
    %p114 = pneg %p108
    %p115 = scmp.eq.s32.totalorder %s13, 3
    %p116 = por %p114, %p115
    %p117 = scmp.ne.s32.totalorder %s109, %s112
    %p118 = scmp.eq.s32.totalorder %s13, 0
    %p119 = por %p117, %p118
    %p120 = scmp.ne.s32.totalorder %s109, %s112
    %p121 = scmp.eq.s32.totalorder %s18, 3
    %p122 = por %p120, %p121
    %p123 = scmp.ne.s32.totalorder %s112, %s113
    %p124 = scmp.eq.s32.totalorder %s18, 0
    %p125 = por %p123, %p124
    %p126 = scmp.ne.s32.totalorder %s112, %s113
    %p127 = scmp.eq.s32.totalorder %s19, 3
    %p128 = por %p126, %p127
    %p130 = scmp.ne.s32.totalorder %s113, %s129
    %p131 = scmp.eq.s32.totalorder %s19, 0
    %p132 = por %p130, %p131
    %s134 = sadd.s32 %s133, 1
    %p137 = scmp.eq.s32.totalorder %s13, 3
    %p138 = scmp.ne.s32.totalorder %s133, %s135
    %p139 = scmp.eq.s32.totalorder %s13, 0
    %p140 = por %p138, %p139
    %p141 = scmp.ne.s32.totalorder %s133, %s135
    %p142 = scmp.eq.s32.totalorder %s18, 3
    %p143 = por %p141, %p142
    %p144 = scmp.ne.s32.totalorder %s135, %s136
    %p145 = scmp.eq.s32.totalorder %s18, 0
    %p146 = por %p144, %p145
    %p147 = scmp.ne.s32.totalorder %s135, %s136
    %p148 = scmp.eq.s32.totalorder %s19, 3
    %p149 = por %p147, %p148
    %p151 = scmp.ne.s32.totalorder %s136, %s150
    %p152 = scmp.eq.s32.totalorder %s19, 0
    %p153 = por %p151, %p152
    %s155 = sadd.s32 %s154, 1
    %p158 = scmp.eq.s32.totalorder %s13, 3
    %p159 = scmp.ne.s32.totalorder %s154, %s156
    %p160 = scmp.eq.s32.totalorder %s13, 0
    %p161 = por %p159, %p160
    %p162 = scmp.ne.s32.totalorder %s154, %s156
    %p163 = scmp.eq.s32.totalorder %s18, 3
    %p164 = por %p162, %p163
    %p165 = scmp.ne.s32.totalorder %s156, %s157
    %p166 = scmp.eq.s32.totalorder %s18, 0
    %p167 = por %p165, %p166
    %p168 = scmp.ne.s32.totalorder %s156, %s157
    %p169 = scmp.eq.s32.totalorder %s19, 3
    %p170 = por %p168, %p169
    %p172 = scmp.ne.s32.totalorder %s157, %s171
    %p173 = scmp.eq.s32.totalorder %s19, 0
    %p174 = por %p172, %p173
    %s176 = sadd.s32 %s175, 1
    %p179 = scmp.eq.s32.totalorder %s13, 3
    %p180 = scmp.ne.s32.totalorder %s175, %s177
    %p181 = scmp.eq.s32.totalorder %s13, 0
    %p182 = por %p180, %p181
    %p183 = scmp.ne.s32.totalorder %s175, %s177
    %p184 = scmp.eq.s32.totalorder %s18, 3
    %p185 = por %p183, %p184
    %p186 = scmp.ne.s32.totalorder %s177, %s178
    %p187 = scmp.eq.s32.totalorder %s18, 0
    %p188 = por %p186, %p187
    %p189 = scmp.ne.s32.totalorder %s177, %s178
    %p190 = scmp.eq.s32.totalorder %s19, 3
    %p191 = por %p189, %p190
    %p193 = scmp.ne.s32.totalorder %s178, %s192
    %p194 = scmp.eq.s32.totalorder %s19, 0
    %p195 = por %p193, %p194
    %s197 = sadd.s32 %s196, 1
    %p200 = scmp.eq.s32.totalorder %s13, 3
    %p201 = scmp.ne.s32.totalorder %s196, %s198
    %p202 = scmp.eq.s32.totalorder %s13, 0
    %p203 = por %p201, %p202
    %p204 = scmp.ne.s32.totalorder %s196, %s198
    %p205 = scmp.eq.s32.totalorder %s18, 3
    %p206 = por %p204, %p205
    %p207 = scmp.ne.s32.totalorder %s198, %s199
    %p208 = scmp.eq.s32.totalorder %s18, 0
    %p209 = por %p207, %p208
    %p210 = scmp.ne.s32.totalorder %s198, %s199
    %p211 = scmp.eq.s32.totalorder %s19, 3
    %p212 = por %p210, %p211
    %p214 = scmp.ne.s32.totalorder %s199, %s213
    %p215 = scmp.eq.s32.totalorder %s19, 0
    %p216 = por %p214, %p215
    %s217 = ssub.s32 %s20, %s32
    %s218 = ssub.s32 %s21, %s28
    %s219 = sor.u32 %s217, %s218
    %p220 = scmp.eq.s32.totalorder %s219, 0
    %s222 = sadd.s32 %s221, 1
    %s223 = scalar_select %p220, %s221, %s222
    %p226 = pneg %p220
    %p227 = scmp.eq.s32.totalorder %s13, 3
    %p228 = por %p226, %p227
    %p229 = scmp.ne.s32.totalorder %s221, %s224
    %p230 = scmp.eq.s32.totalorder %s13, 0
    %p231 = por %p229, %p230
    %p232 = scmp.ne.s32.totalorder %s221, %s224
    %p233 = scmp.eq.s32.totalorder %s18, 3
    %p234 = por %p232, %p233
    %p235 = scmp.ne.s32.totalorder %s224, %s225
    %p236 = scmp.eq.s32.totalorder %s18, 0
    %p237 = por %p235, %p236
    %p238 = scmp.ne.s32.totalorder %s224, %s225
    %p239 = scmp.eq.s32.totalorder %s19, 3
    %p240 = por %p238, %p239
    %p242 = scmp.ne.s32.totalorder %s225, %s241
    %p243 = scmp.eq.s32.totalorder %s19, 0
    %p244 = por %p242, %p243
    %p245 = scmp.le.s32.totalorder 1, %s13
    %p246 = scmp.lt.s32.totalorder %s13, 5
    %p247 = pnand %p245, %p246
    %p248 = pneg %p247
    // Predicated region
    $region9: #{prediction_module.1} parent=5 // pred_check
      _
    $region10: #{prediction_module.1} parent=5 // pred_check_branch
      %250 = sbr.rel (%p247) target = $region12
    $region11: #{prediction_module.1} parent=5 // pred_region
      %s251 = ssub.s32 %s13, 1
      // Predicated region
      $region13: #{prediction_module.1} parent=11 // pred_check
        %p252 = pneg %p146
      $region14: #{prediction_module.1} parent=11 // pred_check_branch
        %254 = sbr.rel (%p252) target = $region16
      $region15: #{prediction_module.1} parent=11 // pred_region
        _
      $region16: #{prediction_module.1} parent=11 // pred_fallthru
        _
      // Predicated region
      $region17: #{prediction_module.1} parent=11 // pred_check
        %p255 = pneg %p167
      $region18: #{prediction_module.1} parent=11 // pred_check_branch
        %257 = sbr.rel (%p255) target = $region20
      $region19: #{prediction_module.1} parent=11 // pred_region
        _
      $region20: #{prediction_module.1} parent=11 // pred_fallthru
        _
      // Predicated region
      $region21: #{prediction_module.1} parent=11 // pred_check
        %p258 = pneg %p188
      $region22: #{prediction_module.1} parent=11 // pred_check_branch
        %260 = sbr.rel (%p258) target = $region24
      $region23: #{prediction_module.1} parent=11 // pred_region
        _
      $region24: #{prediction_module.1} parent=11 // pred_fallthru
        _
      // Predicated region
      $region25: #{prediction_module.1} parent=11 // pred_check
        %p261 = pneg %p209
      $region26: #{prediction_module.1} parent=11 // pred_check_branch
        %263 = sbr.rel (%p261) target = $region28
      $region27: #{prediction_module.1} parent=11 // pred_region
        _
      $region28: #{prediction_module.1} parent=11 // pred_fallthru
        _
    $region12: #{prediction_module.1} parent=5 // pred_fallthru
      _
    %p264 = scmp.lt.s32.totalorder %s13, 4
    // Predicated region
    $region29: #{prediction_module.1} parent=5 // pred_check
      %p265 = pneg %p264
    $region30: #{prediction_module.1} parent=5 // pred_check_branch
      %267 = sbr.rel (%p265) target = $region32
    $region31: #{prediction_module.1} parent=5 // pred_region
      // Predicated region
      $region33: #{prediction_module.1} parent=31 // pred_check
        %p268 = pneg %p55
      $region34: #{prediction_module.1} parent=31 // pred_check_branch
        %270 = sbr.rel (%p268) target = $region36
      $region35: #{prediction_module.1} parent=31 // pred_region
        %s271 = smul.u32 %s21, 8
        %s272 = ssub.s32 %s271, 1
        %p273 = scmp.gt.s32.totalorder %s272, 0
        %s274 = scalar_select %p273, %s272, 0
        %p275 = scmp.lt.s32.totalorder %s20, 1
        %s276 = scalar_select %p275, %s20, 1
        %p277 = scmp.lt.s32.totalorder %s274, 15
        %s278 = scalar_select %p277, %s274, 15
        %s279 = smul.addr %s278, 3
        %s280 = smul.addr %s276, 48
        %s281 = sadd.s32 %s279, %s280
        %s282 = smul.addr %s281, 4
        %s283 = scalar_lea.vmem %s0, %s282
        %s284 = smul.u32 %s21, 8
        %s285 = ssub.s32 %s284, 1
        %p286 = scmp.gt.s32.totalorder %s285, 0
        %s287 = scalar_select %p286, %s285, 0
      $region36: #{prediction_module.1} parent=31 // pred_fallthru
        _
      // Predicated region
      $region37: #{prediction_module.1} parent=31 // pred_check
        %p288 = pneg %p83
      $region38: #{prediction_module.1} parent=31 // pred_check_branch
        %290 = sbr.rel (%p288) target = $region40
      $region39: #{prediction_module.1} parent=31 // pred_region
        %s291 = smul.u32 8, %s21
        %p292 = scmp.lt.s32.totalorder %s20, 1
        %s293 = scalar_select %p292, %s20, 1
        %p294 = scmp.lt.s32.totalorder %s291, 15
        %s295 = scalar_select %p294, %s291, 15
        %s296 = smul.addr %s295, 3
        %s297 = smul.addr %s293, 48
        %s298 = sadd.s32 %s296, %s297
        %s299 = smul.addr %s298, 4
        %s300 = scalar_lea.vmem %s1, %s299
        %s301 = smul.u32 8, %s21
      $region40: #{prediction_module.1} parent=31 // pred_fallthru
        _
      // Predicated region
      $region41: #{prediction_module.1} parent=31 // pred_check
        %p302 = pneg %p119
      $region42: #{prediction_module.1} parent=31 // pred_check_branch
        %304 = sbr.rel (%p302) target = $region44
      $region43: #{prediction_module.1} parent=31 // pred_region
        %s305 = sadd.s32 %s21, 1
        %s306 = smul.u32 %s305, 8
        %p307 = scmp.lt.s32.totalorder %s306, 15
        %s308 = scalar_select %p307, %s306, 15
        %p309 = scmp.lt.s32.totalorder %s20, 1
        %s310 = scalar_select %p309, %s20, 1
        %p311 = scmp.lt.s32.totalorder %s308, 15
        %s312 = scalar_select %p311, %s308, 15
        %s313 = smul.addr %s312, 3
        %s314 = smul.addr %s310, 48
        %s315 = sadd.s32 %s313, %s314
        %s316 = smul.addr %s315, 4
        %s317 = scalar_lea.vmem %s2, %s316
        %s318 = sadd.s32 %s21, 1
        %s319 = smul.u32 %s318, 8
        %p320 = scmp.lt.s32.totalorder %s319, 15
        %s321 = scalar_select %p320, %s319, 15
      $region44: #{prediction_module.1} parent=31 // pred_fallthru
        _
    $region32: #{prediction_module.1} parent=5 // pred_fallthru
      _
    %p322 = scmp.le.s32.totalorder 1, %s13
    %p323 = scmp.lt.s32.totalorder %s13, 5
    %p324 = pnand %p322, %p323
    %p325 = pneg %p324
    // Predicated region
    $region45: #{prediction_module.1} parent=5 // pred_check
      _
    $region46: #{prediction_module.1} parent=5 // pred_check_branch
      %327 = sbr.rel (%p324) target = $region48
    $region47: #{prediction_module.1} parent=5 // pred_region
      %s328 = ssub.s32 %s13, 1
      %s329 = smul.u32 %s23, 8
      %s330 = ssub.s32 %s329, 1
      %p331 = scmp.gt.s32.totalorder %s330, 0
      %s332 = scalar_select %p331, %s330, 0
      %p333 = scmp.lt.s32.totalorder %s22, 1
      %s334 = scalar_select %p333, %s22, 1
      %p335 = scmp.lt.s32.totalorder %s332, 15
      %s336 = scalar_select %p335, %s332, 15
      %s337 = smul.addr %s336, 3
      %s338 = smul.addr %s334, 48
      %s339 = sadd.s32 %s337, %s338
      %s340 = smul.addr %s339, 4
      %s341 = scalar_lea.vmem %s0, %s340
      %p342 = pneg %p61
      %p343 = pneg %p58
      %s344 = smul.u32 8, %s23
      %p345 = scmp.lt.s32.totalorder %s22, 1
      %s346 = scalar_select %p345, %s22, 1
      %p347 = scmp.lt.s32.totalorder %s344, 15
      %s348 = scalar_select %p347, %s344, 15
      %s349 = smul.addr %s348, 3
      %s350 = smul.addr %s346, 48
      %s351 = sadd.s32 %s349, %s350
      %s352 = smul.addr %s351, 4
      %s353 = scalar_lea.vmem %s1, %s352
      %p354 = pneg %p89
      %p355 = pneg %p86
      %s356 = sadd.s32 %s23, 1
      %s357 = smul.u32 %s356, 8
      %p358 = scmp.lt.s32.totalorder %s357, 15
      %s359 = scalar_select %p358, %s357, 15
      %p360 = scmp.lt.s32.totalorder %s22, 1
      %s361 = scalar_select %p360, %s22, 1
      %p362 = scmp.lt.s32.totalorder %s359, 15
      %s363 = scalar_select %p362, %s359, 15
      %s364 = smul.addr %s363, 3
      %s365 = smul.addr %s361, 48
      %s366 = sadd.s32 %s364, %s365
      %s367 = smul.addr %s366, 4
      %s368 = scalar_lea.vmem %s2, %s367
      %p369 = pneg %p125
      %p370 = pneg %p122
      %p371 = pneg %p146
      %p372 = pneg %p143
      %p373 = pneg %p167
      %p374 = pneg %p164
      %p375 = pneg %p188
      %p376 = pneg %p185
      %p377 = pneg %p209
      %p378 = pneg %p206
      %p379 = pneg %p237
      %p380 = pneg %p234
      %s381 = smul.u32 8, %s23
      %p382 = scmp.lt.s32.totalorder %s22, 1
      %s383 = scalar_select %p382, %s22, 1
      %p384 = scmp.lt.s32.totalorder %s381, 15
      %s385 = scalar_select %p384, %s381, 15
      %s386 = smul.addr %s385, 2
      %s387 = smul.addr %s383, 32
      %s388 = sadd.s32 %s386, %s387
      %s389 = smul.addr %s388, 8
      %s390 = scalar_lea.vmem %s7, %s389
      %s391 = smul.u32 %s23, 8
      %s392 = ssub.s32 %s391, 1
      %p393 = scmp.gt.s32.totalorder %s392, 0
      %s394 = scalar_select %p393, %s392, 0
      %p395 = scmp.lt.s32.totalorder %s22, 1
      %s396 = scalar_select %p395, %s22, 1
      %p397 = scmp.lt.s32.totalorder %s394, 15
      %s398 = scalar_select %p397, %s394, 15
      %s399 = smul.addr %s398, 3
      %s400 = smul.addr %s396, 48
      %s401 = sadd.s32 %s399, %s400
      %s402 = smul.addr %s401, 4
      %s403 = scalar_lea.vmem %s0, %s402
      %s404 = smul.u32 %s23, 8
      %s405 = ssub.s32 %s404, 1
      %p406 = scmp.gt.s32.totalorder %s405, 0
      %s407 = scalar_select %p406, %s405, 0
      %s408 = smul.u32 8, %s23
      %p409 = scmp.lt.s32.totalorder %s22, 1
      %s410 = scalar_select %p409, %s22, 1
      %p411 = scmp.lt.s32.totalorder %s408, 15
      %s412 = scalar_select %p411, %s408, 15
      %s413 = smul.addr %s412, 3
      %s414 = smul.addr %s410, 48
      %s415 = sadd.s32 %s413, %s414
      %s416 = smul.addr %s415, 4
      %s417 = scalar_lea.vmem %s1, %s416
      %s418 = smul.u32 8, %s23
      %s419 = sadd.s32 %s23, 1
      %s420 = smul.u32 %s419, 8
      %p421 = scmp.lt.s32.totalorder %s420, 15
      %s422 = scalar_select %p421, %s420, 15
      %p423 = scmp.lt.s32.totalorder %s22, 1
      %s424 = scalar_select %p423, %s22, 1
      %p425 = scmp.lt.s32.totalorder %s422, 15
      %s426 = scalar_select %p425, %s422, 15
      %s427 = smul.addr %s426, 3
      %s428 = smul.addr %s424, 48
      %s429 = sadd.s32 %s427, %s428
      %s430 = smul.addr %s429, 4
      %s431 = scalar_lea.vmem %s2, %s430
      %s432 = sadd.s32 %s23, 1
      %s433 = smul.u32 %s432, 8
      %p434 = scmp.lt.s32.totalorder %s433, 15
      %s435 = scalar_select %p434, %s433, 15
      %s436 = smul.u32 8, %s23
      %p437 = scmp.lt.s32.totalorder %s22, 1
      %s438 = scalar_select %p437, %s22, 1
      %p439 = scmp.lt.s32.totalorder %s436, 15
      %s440 = scalar_select %p439, %s436, 15
      %s441 = smul.addr %s440, 2
      %s442 = smul.addr %s438, 32
      %s443 = sadd.s32 %s441, %s442
      %s444 = smul.addr %s443, 8
      %s445 = scalar_lea.vmem %s7, %s444
      %s446 = smul.u32 8, %s23
      %p448 = scmp.eq.s32.totalorder %s23, 0
      %v449 = vld [vmem:[%s403] sm:$0xf]
      %v450 = vld [vmem:[%s403 + $0x4] sm:$0xf]
      %v451 = vld [vmem:[%s403 + $0x8] sm:$0x1]
      %s452 = scalar_select %p448, 1, 0
      %v453 = vstv %s452
      %vm454 = vcmp.eq.s32.totalorder %v453, 1
      %v455 = vsel %vm454, 0, %v449
      %v456 = vsel %vm454, 0, %v450
      %v457 = vsel %vm454, 0, %v451
      %p458 = scmp.eq.s32.totalorder %s23, 1
      %v459 = vld [vmem:[%s431] sm:$0xf]
      %v460 = vld [vmem:[%s431 + $0x4] sm:$0xf]
      %v461 = vld [vmem:[%s431 + $0x8] sm:$0x1]
      %s462 = scalar_select %p458, 1, 0
      %v463 = vstv %s462
      %vm464 = vcmp.eq.s32.totalorder %v463, 1
      %v465 = vsel %vm464, 0, %v459
      %v466 = vsel %vm464, 0, %v460
      %v467 = vsel %vm464, 0, %v461
      %v468 = vld [vmem:[%s417] sm:$0xf]
      %v469 = vld [vmem:[%s417 + $0x4] sm:$0xf]
      %v470 = vld [vmem:[%s417 + $0x8] sm:$0x1]
      %v471 = vld [vmem:[%s417 + $0xc] sm:$0xf]
      %v472 = vld [vmem:[%s417 + $0x10] sm:$0xf]
      %v473 = vld [vmem:[%s417 + $0x14] sm:$0x1]
      %v474 = vld [vmem:[%s417 + $0x18] sm:$0xf]
      %v475 = vld [vmem:[%s417 + $0x1c] sm:$0xf]
      %v476 = vld [vmem:[%s417 + $0x20] sm:$0x1]
      %v477 = vld [vmem:[%s417 + $0x24] sm:$0xf]
      %v478 = vld [vmem:[%s417 + $0x28] sm:$0xf]
      %v479 = vld [vmem:[%s417 + $0x2c] sm:$0x1]
      %v480 = vld [vmem:[%s417 + $0x30] sm:$0xf]
      %v481 = vld [vmem:[%s417 + $0x34] sm:$0xf]
      %v482 = vld [vmem:[%s417 + $0x38] sm:$0x1]
      %v483 = vld [vmem:[%s417 + $0x3c] sm:$0xf]
      %v484 = vld [vmem:[%s417 + $0x40] sm:$0xf]
      %v485 = vld [vmem:[%s417 + $0x44] sm:$0x1]
      %v486 = vld [vmem:[%s417 + $0x48] sm:$0xf]
      %v487 = vld [vmem:[%s417 + $0x4c] sm:$0xf]
      %v488 = vld [vmem:[%s417 + $0x50] sm:$0x1]
      %v489 = vld [vmem:[%s417 + $0x54] sm:$0xf]
      %v490 = vld [vmem:[%s417 + $0x58] sm:$0xf]
      %v491 = vld [vmem:[%s417 + $0x5c] sm:$0x1]
      %v494 = vunpack.c.l.b16 %v455
      %v495 = vunpack.c.l.b16 %v456
      %v496 = vpack.c.b16 %v495, %v494
      %v498 = vunpack.c.l.b16 %v457
      %v499 = vpack.c.b16 %v498, %v498
      %vm500 = vsmask.f32 7424
      %v502 = vshrl.u32 %v496, 16
      %v504 = vshll.u32 %v496, 16
      %v506 = vrot.slane %v504, 1
      %v507 = vor.u32 %v502, %v506
      %v509 = vshll.u32 %v499, 16
      %v511 = vrot.slane %v509, 1
      %v512 = vsel %vm500, %v507, %v511
      %513 = vrot.lane.b32.xlu0 %v512, 4
      %v514 = vpop.permute.xlu0 %513
      %vm515 = vcmask 1046528
      %v516 = vrot.slane %v496, 1
      %v517 = vrot.slane %v499, 1
      %v518 = vsel %vm515, %v516, %v517
      %519 = vrot.lane.b32.xlu0 %v518, 8
      %v520 = vpop.permute.xlu0 %519
      %vm521 = vcmask 31744
      %v523 = vsel %vm521, %v496, %v514
      %vm524 = vcmask 64512
      %v526 = vsel %vm524, %v523, %v520
      %vm528 = vcmask 97280
      %529 = vst.msk [vmem:[#allocation2] sm:$0xff] %vm528, %v526
      %v546 = vunpack.c.l.b16 %v468
      %v547 = vunpack.c.l.b16 %v469
      %v548 = vunpack.c.l.b16 %v471
      %v549 = vunpack.c.l.b16 %v472
      %v550 = vunpack.c.l.b16 %v474
      %v551 = vunpack.c.l.b16 %v475
      %v552 = vunpack.c.l.b16 %v477
      %v553 = vunpack.c.l.b16 %v478
      %v554 = vunpack.c.l.b16 %v480
      %v555 = vunpack.c.l.b16 %v481
      %v556 = vunpack.c.l.b16 %v483
      %v557 = vunpack.c.l.b16 %v484
      %v558 = vunpack.c.l.b16 %v486
      %v559 = vunpack.c.l.b16 %v487
      %v560 = vunpack.c.l.b16 %v489
      %v561 = vunpack.c.l.b16 %v490
      %v562 = vpack.c.b16 %v547, %v546
      %v563 = vpack.c.b16 %v549, %v548
      %v564 = vpack.c.b16 %v551, %v550
      %v565 = vpack.c.b16 %v553, %v552
      %v566 = vpack.c.b16 %v555, %v554
      %v567 = vpack.c.b16 %v557, %v556
      %v568 = vpack.c.b16 %v559, %v558
      %v569 = vpack.c.b16 %v561, %v560
      %v578 = vunpack.c.l.b16 %v470
      %v579 = vunpack.c.l.b16 %v473
      %v580 = vunpack.c.l.b16 %v476
      %v581 = vunpack.c.l.b16 %v479
      %v582 = vunpack.c.l.b16 %v482
      %v583 = vunpack.c.l.b16 %v485
      %v584 = vunpack.c.l.b16 %v488
      %v585 = vunpack.c.l.b16 %v491
      %v586 = vpack.c.b16 %v578, %v578
      %v587 = vpack.c.b16 %v579, %v579
      %v588 = vpack.c.b16 %v580, %v580
      %v589 = vpack.c.b16 %v581, %v581
      %v590 = vpack.c.b16 %v582, %v582
      %v591 = vpack.c.b16 %v583, %v583
      %v592 = vpack.c.b16 %v584, %v584
      %v593 = vpack.c.b16 %v585, %v585
      %v595 = vshrl.u32 %v562, 16
      %v597 = vshll.u32 %v562, 16
      %v599 = vrot.slane %v597, 1
      %v600 = vor.u32 %v595, %v599
      %v602 = vshll.u32 %v586, 16
      %v604 = vrot.slane %v602, 1
      %v605 = vsel %vm500, %v600, %v604
      %v607 = vshrl.u32 %v563, 16
      %v609 = vshll.u32 %v563, 16
      %v611 = vrot.slane %v609, 1
      %v612 = vor.u32 %v607, %v611
      %v614 = vshll.u32 %v587, 16
      %v616 = vrot.slane %v614, 1
      %v617 = vsel %vm500, %v612, %v616
      %v619 = vshrl.u32 %v564, 16
      %v621 = vshll.u32 %v564, 16
      %v623 = vrot.slane %v621, 1
      %v624 = vor.u32 %v619, %v623
      %v626 = vshll.u32 %v588, 16
      %v628 = vrot.slane %v626, 1
      %v629 = vsel %vm500, %v624, %v628
      %v631 = vshrl.u32 %v565, 16
      %v633 = vshll.u32 %v565, 16
      %v635 = vrot.slane %v633, 1
      %v636 = vor.u32 %v631, %v635
      %v638 = vshll.u32 %v589, 16
      %v640 = vrot.slane %v638, 1
      %v641 = vsel %vm500, %v636, %v640
      %v643 = vshrl.u32 %v566, 16
      %v645 = vshll.u32 %v566, 16
      %v647 = vrot.slane %v645, 1
      %v648 = vor.u32 %v643, %v647
      %v650 = vshll.u32 %v590, 16
      %v652 = vrot.slane %v650, 1
      %v653 = vsel %vm500, %v648, %v652
      %v655 = vshrl.u32 %v567, 16
      %v657 = vshll.u32 %v567, 16
      %v659 = vrot.slane %v657, 1
      %v660 = vor.u32 %v655, %v659
      %v662 = vshll.u32 %v591, 16
      %v664 = vrot.slane %v662, 1
      %v665 = vsel %vm500, %v660, %v664
      %v667 = vshrl.u32 %v568, 16
      %v669 = vshll.u32 %v568, 16
      %v671 = vrot.slane %v669, 1
      %v672 = vor.u32 %v667, %v671
      %v674 = vshll.u32 %v592, 16
      %v676 = vrot.slane %v674, 1
      %v677 = vsel %vm500, %v672, %v676
      %v679 = vshrl.u32 %v569, 16
      %v681 = vshll.u32 %v569, 16
      %v683 = vrot.slane %v681, 1
      %v684 = vor.u32 %v679, %v683
      %v686 = vshll.u32 %v593, 16
      %v688 = vrot.slane %v686, 1
      %v689 = vsel %vm500, %v684, %v688
      %690 = vrot.lane.b32.xlu0 %v605, 4
      %v691 = vpop.permute.xlu0 %690
      %692 = vrot.lane.b32.xlu0 %v617, 4
      %v693 = vpop.permute.xlu0 %692
      %694 = vrot.lane.b32.xlu0 %v629, 4
      %v695 = vpop.permute.xlu0 %694
      %696 = vrot.lane.b32.xlu0 %v641, 4
      %v697 = vpop.permute.xlu0 %696
      %698 = vrot.lane.b32.xlu0 %v653, 4
      %v699 = vpop.permute.xlu0 %698
      %700 = vrot.lane.b32.xlu0 %v665, 4
      %v701 = vpop.permute.xlu0 %700
      %702 = vrot.lane.b32.xlu0 %v677, 4
      %v703 = vpop.permute.xlu0 %702
      %704 = vrot.lane.b32.xlu0 %v689, 4
      %v705 = vpop.permute.xlu0 %704
      %v706 = vrot.slane %v562, 1
      %v707 = vrot.slane %v586, 1
      %v708 = vsel %vm515, %v706, %v707
      %v709 = vrot.slane %v563, 1
      %v710 = vrot.slane %v587, 1
      %v711 = vsel %vm515, %v709, %v710
      %v712 = vrot.slane %v564, 1
      %v713 = vrot.slane %v588, 1
      %v714 = vsel %vm515, %v712, %v713
      %v715 = vrot.slane %v565, 1
      %v716 = vrot.slane %v589, 1
      %v717 = vsel %vm515, %v715, %v716
      %v718 = vrot.slane %v566, 1
      %v719 = vrot.slane %v590, 1
      %v720 = vsel %vm515, %v718, %v719
      %v721 = vrot.slane %v567, 1
      %v722 = vrot.slane %v591, 1
      %v723 = vsel %vm515, %v721, %v722
      %v724 = vrot.slane %v568, 1
      %v725 = vrot.slane %v592, 1
      %v726 = vsel %vm515, %v724, %v725
      %v727 = vrot.slane %v569, 1
      %v728 = vrot.slane %v593, 1
      %v729 = vsel %vm515, %v727, %v728
      %730 = vrot.lane.b32.xlu0 %v708, 8
      %v731 = vpop.permute.xlu0 %730
      %732 = vrot.lane.b32.xlu0 %v711, 8
      %v733 = vpop.permute.xlu0 %732
      %734 = vrot.lane.b32.xlu0 %v714, 8
      %v735 = vpop.permute.xlu0 %734
      %736 = vrot.lane.b32.xlu0 %v717, 8
      %v737 = vpop.permute.xlu0 %736
      %738 = vrot.lane.b32.xlu0 %v720, 8
      %v739 = vpop.permute.xlu0 %738
      %740 = vrot.lane.b32.xlu0 %v723, 8
      %v741 = vpop.permute.xlu0 %740
      %742 = vrot.lane.b32.xlu0 %v726, 8
      %v743 = vpop.permute.xlu0 %742
      %744 = vrot.lane.b32.xlu0 %v729, 8
      %v745 = vpop.permute.xlu0 %744
      %v747 = vsel %vm521, %v562, %v691
      %v749 = vsel %vm521, %v563, %v693
      %v751 = vsel %vm521, %v564, %v695
      %v753 = vsel %vm521, %v565, %v697
      %v755 = vsel %vm521, %v566, %v699
      %v757 = vsel %vm521, %v567, %v701
      %v759 = vsel %vm521, %v568, %v703
      %v761 = vsel %vm521, %v569, %v705
      %v763 = vsel %vm524, %v747, %v731
      %v766 = vsel %vm524, %v749, %v733
      %v769 = vsel %vm524, %v751, %v735
      %v772 = vsel %vm524, %v753, %v737
      %v775 = vsel %vm524, %v755, %v739
      %v778 = vsel %vm524, %v757, %v741
      %v781 = vsel %vm524, %v759, %v743
      %v784 = vsel %vm524, %v761, %v745
      %s786 = scalar_lea.vmem [#allocation2], 8
      %787 = vst.msk [vmem:[%s786] sm:$0xff] %vm528, %v763
      %788 = vst.msk [vmem:[%s786 + $0x8] sm:$0xff] %vm528, %v766
      %789 = vst.msk [vmem:[%s786 + $0x10] sm:$0xff] %vm528, %v769
      %790 = vst.msk [vmem:[%s786 + $0x18] sm:$0xff] %vm528, %v772
      %791 = vst.msk [vmem:[%s786 + $0x20] sm:$0xff] %vm528, %v775
      %792 = vst.msk [vmem:[%s786 + $0x28] sm:$0xff] %vm528, %v778
      %793 = vst.msk [vmem:[%s786 + $0x30] sm:$0xff] %vm528, %v781
      %794 = vst.msk [vmem:[%s786 + $0x38] sm:$0xff] %vm528, %v784
      %v797 = vunpack.c.l.b16 %v465
      %v798 = vunpack.c.l.b16 %v466
      %v799 = vpack.c.b16 %v798, %v797
      %v801 = vunpack.c.l.b16 %v467
      %v802 = vpack.c.b16 %v801, %v801
      %v804 = vshrl.u32 %v799, 16
      %v806 = vshll.u32 %v799, 16
      %v808 = vrot.slane %v806, 1
      %v809 = vor.u32 %v804, %v808
      %v811 = vshll.u32 %v802, 16
      %v813 = vrot.slane %v811, 1
      %v814 = vsel %vm500, %v809, %v813
      %815 = vrot.lane.b32.xlu0 %v814, 4
      %v816 = vpop.permute.xlu0 %815
      %v817 = vrot.slane %v799, 1
      %v818 = vrot.slane %v802, 1
      %v819 = vsel %vm515, %v817, %v818
      %820 = vrot.lane.b32.xlu0 %v819, 8
      %v821 = vpop.permute.xlu0 %820
      %v823 = vsel %vm521, %v799, %v816
      %v825 = vsel %vm524, %v823, %v821
      %s827 = scalar_lea.vmem [#allocation2], 72
      %828 = vst.msk [vmem:[%s827] sm:$0xff] %vm528, %v825
      %v829 = vld [vmem:[#allocation2] sm:$0xff]
      %v830 = vld [vmem:[#allocation2 + $0x8] sm:$0xff]
      %v831 = vld [vmem:[#allocation2 + $0x10] sm:$0xff]
      %v832 = vld [vmem:[#allocation2 + $0x18] sm:$0xff]
      %v833 = vld [vmem:[#allocation2 + $0x20] sm:$0xff]
      %v834 = vld [vmem:[#allocation2 + $0x28] sm:$0xff]
      %v835 = vld [vmem:[#allocation2 + $0x30] sm:$0xff]
      %v836 = vld [vmem:[#allocation2 + $0x38] sm:$0xff]
      %v837 = vld [vmem:[%s786] sm:$0xff]
      %v838 = vld [vmem:[%s786 + $0x8] sm:$0xff]
      %v839 = vld [vmem:[%s786 + $0x10] sm:$0xff]
      %v840 = vld [vmem:[%s786 + $0x18] sm:$0xff]
      %v841 = vld [vmem:[%s786 + $0x20] sm:$0xff]
      %v842 = vld [vmem:[%s786 + $0x28] sm:$0xff]
      %v843 = vld [vmem:[%s786 + $0x30] sm:$0xff]
      %v844 = vld [vmem:[%s786 + $0x38] sm:$0xff]
      %s845 = scalar_lea.vmem [#allocation2], 16
      %v846 = vld [vmem:[%s845] sm:$0xff]
      %v847 = vld [vmem:[%s845 + $0x8] sm:$0xff]
      %v848 = vld [vmem:[%s845 + $0x10] sm:$0xff]
      %v849 = vld [vmem:[%s845 + $0x18] sm:$0xff]
      %v850 = vld [vmem:[%s845 + $0x20] sm:$0xff]
      %v851 = vld [vmem:[%s845 + $0x28] sm:$0xff]
      %v852 = vld [vmem:[%s845 + $0x30] sm:$0xff]
      %v853 = vld [vmem:[%s845 + $0x38] sm:$0xff]
      %v854 = vld [vmem:[%s3] sm:$0xf]
      %v855 = vld [vmem:[%s3 + $0x4] sm:$0x3]
      %s856 = scalar_lea.vmem %s3, 8
      %v857 = vld [vmem:[%s856] sm:$0xf]
      %v858 = vld [vmem:[%s856 + $0x4] sm:$0x3]
      %v861 = vunpack.c.l.b16 %v857
      %v862 = vunpack.c.l.b16 %v858
      %v863 = vpack.c.b16 %v862, %v861
      %v865 = vsel %vm528, %v837, 0
      %v868 = vsel %vm528, %v838, 0
      %v871 = vsel %vm528, %v839, 0
      %v874 = vsel %vm528, %v840, 0
      %v877 = vsel %vm528, %v841, 0
      %v880 = vsel %vm528, %v842, 0
      %v883 = vsel %vm528, %v843, 0
      %v886 = vsel %vm528, %v844, 0
      %vm888 = vcmask 1045504
      %v890 = vsel %vm888, %v863, 0
      %892 = vmatprep.subr.bf16.mxu0 0
      %893 = vmatpush1.bf16.msra.mxu0 %v890
      %894 = vmatprep.subr.bf16.mxu0 0
      %895 = vmatpush1.bf16.msra.mxu0 0
      %896 = vmatprep.subr.bf16.mxu0 0
      %897 = vmatpush1.bf16.msra.mxu0 0
      %898 = vmatprep.subr.bf16.mxu0 0
      %899 = vmatpush1.bf16.msra.mxu0 0
      %900 = vmatprep.subr.bf16.mxu0 0
      %901 = vmatpush1.bf16.msra.mxu0 0
      %902 = vmatprep.subr.bf16.mxu0 0
      %903 = vmatpush1.bf16.msra.mxu0 0
      %904 = vmatprep.subr.bf16.mxu0 0
      %905 = vmatpush1.bf16.msra.mxu0 0
      %906 = vmatprep.subr.bf16.mxu0 0
      %907 = vmatpush1.bf16.msra.mxu0 0
      %908 = vmatprep.subr.bf16.mxu0 0
      %909 = vmatpush1.bf16.msra.mxu0 0
      %910 = vmatprep.subr.bf16.mxu0 0
      %911 = vmatpush1.bf16.msra.mxu0 0
      %912 = vmatprep.subr.bf16.mxu0 0
      %913 = vmatpush1.bf16.msra.mxu0 0
      %914 = vmatprep.subr.bf16.mxu0 0
      %915 = vmatpush1.bf16.msra.mxu0 0
      %916 = vmatprep.subr.bf16.mxu0 0
      %917 = vmatpush1.bf16.msra.mxu0 0
      %918 = vmatprep.subr.bf16.mxu0 0
      %919 = vmatpush1.bf16.msra.mxu0 0
      %920 = vmatprep.subr.bf16.mxu0 0
      %921 = vmatpush1.bf16.msra.mxu0 0
      %922 = vmatprep.subr.bf16.mxu0 0
      %923 = vmatpush1.bf16.msra.mxu0 0
      %924 = vmatprep.mubr.bf16.mxu0 0
      %925 = vmatmul.mubr.bf16.gmra.mrb[0].mxu0 %v865
      %v926 = vpop.f32.mrb[0].mxu0
      %v927 = vadd.f32 0.0, %v926
      %v928 = vpop.f32.mrb[0].mxu0
      %v929 = vpop.f32.mrb[0].mxu0
      %v930 = vadd.f32 0.0, %v929
      %v931 = vpop.f32.mrb[0].mxu0
      %932 = vmatprep.mubr.bf16.mxu0 0
      %933 = vmatmul.mubr.bf16.gmra.mrb[0].mxu0 %v868
      %v934 = vpop.f32.mrb[0].mxu0
      %v935 = vadd.f32 0.0, %v934
      %v936 = vpop.f32.mrb[0].mxu0
      %v937 = vpop.f32.mrb[0].mxu0
      %v938 = vadd.f32 0.0, %v937
      %v939 = vpop.f32.mrb[0].mxu0
      %940 = vmatprep.mubr.bf16.mxu0 0
      %941 = vmatmul.mubr.bf16.gmra.mrb[0].mxu0 %v871
      %v942 = vpop.f32.mrb[0].mxu0
      %v943 = vadd.f32 0.0, %v942
      %v944 = vpop.f32.mrb[0].mxu0
      %v945 = vpop.f32.mrb[0].mxu0
      %v946 = vadd.f32 0.0, %v945
      %v947 = vpop.f32.mrb[0].mxu0
      %948 = vmatprep.mubr.bf16.mxu0 0
      %949 = vmatmul.mubr.bf16.gmra.mrb[0].mxu0 %v874
      %v950 = vpop.f32.mrb[0].mxu0
      %v951 = vadd.f32 0.0, %v950
      %v952 = vpop.f32.mrb[0].mxu0
      %v953 = vpop.f32.mrb[0].mxu0
      %v954 = vadd.f32 0.0, %v953
      %v955 = vpop.f32.mrb[0].mxu0
      %956 = vmatprep.mubr.bf16.mxu0 0
      %957 = vmatmul.mubr.bf16.gmra.mrb[0].mxu0 %v877
      %v958 = vpop.f32.mrb[0].mxu0
      %v959 = vadd.f32 0.0, %v958
      %v960 = vpop.f32.mrb[0].mxu0
      %v961 = vpop.f32.mrb[0].mxu0
      %v962 = vadd.f32 0.0, %v961
      %v963 = vpop.f32.mrb[0].mxu0
      %964 = vmatprep.mubr.bf16.mxu0 0
      %965 = vmatmul.mubr.bf16.gmra.mrb[0].mxu0 %v880
      %v966 = vpop.f32.mrb[0].mxu0
      %v967 = vadd.f32 0.0, %v966
      %v968 = vpop.f32.mrb[0].mxu0
      %v969 = vpop.f32.mrb[0].mxu0
      %v970 = vadd.f32 0.0, %v969
      %v971 = vpop.f32.mrb[0].mxu0
      %972 = vmatprep.mubr.bf16.mxu0 0
      %973 = vmatmul.mubr.bf16.gmra.mrb[0].mxu0 %v883
      %v974 = vpop.f32.mrb[0].mxu0
      %v975 = vadd.f32 0.0, %v974
      %v976 = vpop.f32.mrb[0].mxu0
      %v977 = vpop.f32.mrb[0].mxu0
      %v978 = vadd.f32 0.0, %v977
      %v979 = vpop.f32.mrb[0].mxu0
      %980 = vmatprep.mubr.bf16.mxu0 0
      %981 = vmatmul.mubr.bf16.gmra.mrb[0].mxu0 %v886
      %v982 = vpop.f32.mrb[0].mxu0
      %v983 = vadd.f32 0.0, %v982
      %v984 = vpop.f32.mrb[0].mxu0
      %v985 = vpop.f32.mrb[0].mxu0
      %v986 = vadd.f32 0.0, %v985
      %v987 = vpop.f32.mrb[0].mxu0
      %988 = vdwg.mxu0
      %v991 = vunpack.c.l.b16 %v854
      %v992 = vunpack.c.l.b16 %v855
      %v993 = vpack.c.b16 %v992, %v991
      %v995 = vsel %vm528, %v829, 0
      %v998 = vsel %vm528, %v830, 0
      %v1001 = vsel %vm528, %v831, 0
      %v1004 = vsel %vm528, %v832, 0
      %v1007 = vsel %vm528, %v833, 0
      %v1010 = vsel %vm528, %v834, 0
      %v1013 = vsel %vm528, %v835, 0
      %v1016 = vsel %vm528, %v836, 0
      %v1019 = vsel %vm888, %v993, 0
      %1021 = vmatprep.subr.bf16.mxu0 0
      %1022 = vmatpush1.bf16.msra.mxu0 %v1019
      %1023 = vmatprep.subr.bf16.mxu0 0
      %1024 = vmatpush1.bf16.msra.mxu0 0
      %1025 = vmatprep.subr.bf16.mxu0 0
      %1026 = vmatpush1.bf16.msra.mxu0 0
      %1027 = vmatprep.subr.bf16.mxu0 0
      %1028 = vmatpush1.bf16.msra.mxu0 0
      %1029 = vmatprep.subr.bf16.mxu0 0
      %1030 = vmatpush1.bf16.msra.mxu0 0
      %1031 = vmatprep.subr.bf16.mxu0 0
      %1032 = vmatpush1.bf16.msra.mxu0 0
      %1033 = vmatprep.subr.bf16.mxu0 0
      %1034 = vmatpush1.bf16.msra.mxu0 0
      %1035 = vmatprep.subr.bf16.mxu0 0
      %1036 = vmatpush1.bf16.msra.mxu0 0
      %1037 = vmatprep.subr.bf16.mxu0 0
      %1038 = vmatpush1.bf16.msra.mxu0 0
      %1039 = vmatprep.subr.bf16.mxu0 0
      %1040 = vmatpush1.bf16.msra.mxu0 0
      %1041 = vmatprep.subr.bf16.mxu0 0
      %1042 = vmatpush1.bf16.msra.mxu0 0
      %1043 = vmatprep.subr.bf16.mxu0 0
      %1044 = vmatpush1.bf16.msra.mxu0 0
      %1045 = vmatprep.subr.bf16.mxu0 0
      %1046 = vmatpush1.bf16.msra.mxu0 0
      %1047 = vmatprep.subr.bf16.mxu0 0
      %1048 = vmatpush1.bf16.msra.mxu0 0
      %1049 = vmatprep.subr.bf16.mxu0 0
      %1050 = vmatpush1.bf16.msra.mxu0 0
      %1051 = vmatprep.subr.bf16.mxu0 0
      %1052 = vmatpush1.bf16.msra.mxu0 0
      %1053 = vmatprep.mubr.bf16.mxu0 0
      %1054 = vmatmul.mubr.bf16.gmra.mrb[0].mxu0 %v995
      %v1055 = vpop.f32.mrb[0].mxu0
      %v1056 = vadd.f32 %v927, %v1055
      %v1057 = vpop.f32.mrb[0].mxu0
      %v1058 = vpop.f32.mrb[0].mxu0
      %v1059 = vadd.f32 %v930, %v1058
      %v1060 = vpop.f32.mrb[0].mxu0
      %1061 = vmatprep.mubr.bf16.mxu0 0
      %1062 = vmatmul.mubr.bf16.gmra.mrb[0].mxu0 %v998
      %v1063 = vpop.f32.mrb[0].mxu0
      %v1064 = vadd.f32 %v935, %v1063
      %v1065 = vpop.f32.mrb[0].mxu0
      %v1066 = vpop.f32.mrb[0].mxu0
      %v1067 = vadd.f32 %v938, %v1066
      %v1068 = vpop.f32.mrb[0].mxu0
      %1069 = vmatprep.mubr.bf16.mxu0 0
      %1070 = vmatmul.mubr.bf16.gmra.mrb[0].mxu0 %v1001
      %v1071 = vpop.f32.mrb[0].mxu0
      %v1072 = vadd.f32 %v943, %v1071
      %v1073 = vpop.f32.mrb[0].mxu0
      %v1074 = vpop.f32.mrb[0].mxu0
      %v1075 = vadd.f32 %v946, %v1074
      %v1076 = vpop.f32.mrb[0].mxu0
      %1077 = vmatprep.mubr.bf16.mxu0 0
      %1078 = vmatmul.mubr.bf16.gmra.mrb[0].mxu0 %v1004
      %v1079 = vpop.f32.mrb[0].mxu0
      %v1080 = vadd.f32 %v951, %v1079
      %v1081 = vpop.f32.mrb[0].mxu0
      %v1082 = vpop.f32.mrb[0].mxu0
      %v1083 = vadd.f32 %v954, %v1082
      %v1084 = vpop.f32.mrb[0].mxu0
      %1085 = vmatprep.mubr.bf16.mxu0 0
      %1086 = vmatmul.mubr.bf16.gmra.mrb[0].mxu0 %v1007
      %v1087 = vpop.f32.mrb[0].mxu0
      %v1088 = vadd.f32 %v959, %v1087
      %v1089 = vpop.f32.mrb[0].mxu0
      %v1090 = vpop.f32.mrb[0].mxu0
      %v1091 = vadd.f32 %v962, %v1090
      %v1092 = vpop.f32.mrb[0].mxu0
      %1093 = vmatprep.mubr.bf16.mxu0 0
      %1094 = vmatmul.mubr.bf16.gmra.mrb[0].mxu0 %v1010
      %v1095 = vpop.f32.mrb[0].mxu0
      %v1096 = vadd.f32 %v967, %v1095
      %v1097 = vpop.f32.mrb[0].mxu0
      %v1098 = vpop.f32.mrb[0].mxu0
      %v1099 = vadd.f32 %v970, %v1098
      %v1100 = vpop.f32.mrb[0].mxu0
      %1101 = vmatprep.mubr.bf16.mxu0 0
      %1102 = vmatmul.mubr.bf16.gmra.mrb[0].mxu0 %v1013
      %v1103 = vpop.f32.mrb[0].mxu0
      %v1104 = vadd.f32 %v975, %v1103
      %v1105 = vpop.f32.mrb[0].mxu0
      %v1106 = vpop.f32.mrb[0].mxu0
      %v1107 = vadd.f32 %v978, %v1106
      %v1108 = vpop.f32.mrb[0].mxu0
      %1109 = vmatprep.mubr.bf16.mxu0 0
      %1110 = vmatmul.mubr.bf16.gmra.mrb[0].mxu0 %v1016
      %v1111 = vpop.f32.mrb[0].mxu0
      %v1112 = vadd.f32 %v983, %v1111
      %v1113 = vpop.f32.mrb[0].mxu0
      %v1114 = vpop.f32.mrb[0].mxu0
      %v1115 = vadd.f32 %v986, %v1114
      %v1116 = vpop.f32.mrb[0].mxu0
      %1117 = vdwg.mxu0
      %s1118 = scalar_lea.vmem %s3, 16
      %v1119 = vld [vmem:[%s1118] sm:$0xf]
      %v1120 = vld [vmem:[%s1118 + $0x4] sm:$0x3]
      %v1123 = vunpack.c.l.b16 %v1119
      %v1124 = vunpack.c.l.b16 %v1120
      %v1125 = vpack.c.b16 %v1124, %v1123
      %v1127 = vsel %vm528, %v846, 0
      %v1130 = vsel %vm528, %v847, 0
      %v1133 = vsel %vm528, %v848, 0
      %v1136 = vsel %vm528, %v849, 0
      %v1139 = vsel %vm528, %v850, 0
      %v1142 = vsel %vm528, %v851, 0
      %v1145 = vsel %vm528, %v852, 0
      %v1148 = vsel %vm528, %v853, 0
      %v1151 = vsel %vm888, %v1125, 0
      %1153 = vmatprep.subr.bf16.mxu0 0
      %1154 = vmatpush1.bf16.msra.mxu0 %v1151
      %1155 = vmatprep.subr.bf16.mxu0 0
      %1156 = vmatpush1.bf16.msra.mxu0 0
      %1157 = vmatprep.subr.bf16.mxu0 0
      %1158 = vmatpush1.bf16.msra.mxu0 0
      %1159 = vmatprep.subr.bf16.mxu0 0
      %1160 = vmatpush1.bf16.msra.mxu0 0
      %1161 = vmatprep.subr.bf16.mxu0 0
      %1162 = vmatpush1.bf16.msra.mxu0 0
      %1163 = vmatprep.subr.bf16.mxu0 0
      %1164 = vmatpush1.bf16.msra.mxu0 0
      %1165 = vmatprep.subr.bf16.mxu0 0
      %1166 = vmatpush1.bf16.msra.mxu0 0
      %1167 = vmatprep.subr.bf16.mxu0 0
      %1168 = vmatpush1.bf16.msra.mxu0 0
      %1169 = vmatprep.subr.bf16.mxu0 0
      %1170 = vmatpush1.bf16.msra.mxu0 0
      %1171 = vmatprep.subr.bf16.mxu0 0
      %1172 = vmatpush1.bf16.msra.mxu0 0
      %1173 = vmatprep.subr.bf16.mxu0 0
      %1174 = vmatpush1.bf16.msra.mxu0 0
      %1175 = vmatprep.subr.bf16.mxu0 0
      %1176 = vmatpush1.bf16.msra.mxu0 0
      %1177 = vmatprep.subr.bf16.mxu0 0
      %1178 = vmatpush1.bf16.msra.mxu0 0
      %1179 = vmatprep.subr.bf16.mxu0 0
      %1180 = vmatpush1.bf16.msra.mxu0 0
      %1181 = vmatprep.subr.bf16.mxu0 0
      %1182 = vmatpush1.bf16.msra.mxu0 0
      %1183 = vmatprep.subr.bf16.mxu0 0
      %1184 = vmatpush1.bf16.msra.mxu0 0
      %1185 = vmatprep.mubr.bf16.mxu0 0
      %1186 = vmatmul.mubr.bf16.gmra.mrb[0].mxu0 %v1127
      %v1187 = vpop.f32.mrb[0].mxu0
      %v1188 = vadd.f32 0.0, %v1187
      %v1189 = vpop.f32.mrb[0].mxu0
      %v1190 = vpop.f32.mrb[0].mxu0
      %v1191 = vadd.f32 0.0, %v1190
      %v1192 = vpop.f32.mrb[0].mxu0
      %1193 = vmatprep.mubr.bf16.mxu0 0
      %1194 = vmatmul.mubr.bf16.gmra.mrb[0].mxu0 %v1130
      %v1195 = vpop.f32.mrb[0].mxu0
      %v1196 = vadd.f32 0.0, %v1195
      %v1197 = vpop.f32.mrb[0].mxu0
      %v1198 = vpop.f32.mrb[0].mxu0
      %v1199 = vadd.f32 0.0, %v1198
      %v1200 = vpop.f32.mrb[0].mxu0
      %1201 = vmatprep.mubr.bf16.mxu0 0
      %1202 = vmatmul.mubr.bf16.gmra.mrb[0].mxu0 %v1133
      %v1203 = vpop.f32.mrb[0].mxu0
      %v1204 = vadd.f32 0.0, %v1203
      %v1205 = vpop.f32.mrb[0].mxu0
      %v1206 = vpop.f32.mrb[0].mxu0
      %v1207 = vadd.f32 0.0, %v1206
      %v1208 = vpop.f32.mrb[0].mxu0
      %1209 = vmatprep.mubr.bf16.mxu0 0
      %1210 = vmatmul.mubr.bf16.gmra.mrb[0].mxu0 %v1136
      %v1211 = vpop.f32.mrb[0].mxu0
      %v1212 = vadd.f32 0.0, %v1211
      %v1213 = vpop.f32.mrb[0].mxu0
      %v1214 = vpop.f32.mrb[0].mxu0
      %v1215 = vadd.f32 0.0, %v1214
      %v1216 = vpop.f32.mrb[0].mxu0
      %1217 = vmatprep.mubr.bf16.mxu0 0
      %1218 = vmatmul.mubr.bf16.gmra.mrb[0].mxu0 %v1139
      %v1219 = vpop.f32.mrb[0].mxu0
      %v1220 = vadd.f32 0.0, %v1219
      %v1221 = vpop.f32.mrb[0].mxu0
      %v1222 = vpop.f32.mrb[0].mxu0
      %v1223 = vadd.f32 0.0, %v1222
      %v1224 = vpop.f32.mrb[0].mxu0
      %1225 = vmatprep.mubr.bf16.mxu0 0
      %1226 = vmatmul.mubr.bf16.gmra.mrb[0].mxu0 %v1142
      %v1227 = vpop.f32.mrb[0].mxu0
      %v1228 = vadd.f32 0.0, %v1227
      %v1229 = vpop.f32.mrb[0].mxu0
      %v1230 = vpop.f32.mrb[0].mxu0
      %v1231 = vadd.f32 0.0, %v1230
      %v1232 = vpop.f32.mrb[0].mxu0
      %1233 = vmatprep.mubr.bf16.mxu0 0
      %1234 = vmatmul.mubr.bf16.gmra.mrb[0].mxu0 %v1145
      %v1235 = vpop.f32.mrb[0].mxu0
      %v1236 = vadd.f32 0.0, %v1235
      %v1237 = vpop.f32.mrb[0].mxu0
      %v1238 = vpop.f32.mrb[0].mxu0
      %v1239 = vadd.f32 0.0, %v1238
      %v1240 = vpop.f32.mrb[0].mxu0
      %1241 = vmatprep.mubr.bf16.mxu0 0
      %1242 = vmatmul.mubr.bf16.gmra.mrb[0].mxu0 %v1148
      %v1243 = vpop.f32.mrb[0].mxu0
      %v1244 = vadd.f32 0.0, %v1243
      %v1245 = vpop.f32.mrb[0].mxu0
      %v1246 = vpop.f32.mrb[0].mxu0
      %v1247 = vadd.f32 0.0, %v1246
      %v1248 = vpop.f32.mrb[0].mxu0
      %1249 = vdwg.mxu0
      %v1250 = vadd.f32 %v1056, %v1188
      %v1251 = vadd.f32 %v1059, %v1191
      %v1252 = vadd.f32 %v1064, %v1196
      %v1253 = vadd.f32 %v1067, %v1199
      %v1254 = vadd.f32 %v1072, %v1204
      %v1255 = vadd.f32 %v1075, %v1207
      %v1256 = vadd.f32 %v1080, %v1212
      %v1257 = vadd.f32 %v1083, %v1215
      %v1258 = vadd.f32 %v1088, %v1220
      %v1259 = vadd.f32 %v1091, %v1223
      %v1260 = vadd.f32 %v1096, %v1228
      %v1261 = vadd.f32 %v1099, %v1231
      %v1262 = vadd.f32 %v1104, %v1236
      %v1263 = vadd.f32 %v1107, %v1239
      %v1264 = vadd.f32 %v1112, %v1244
      %v1265 = vadd.f32 %v1115, %v1247
      %v1266 = vld [vmem:[%s4] sm:$0x1]
      %v1268 = vlaneseq
      %v1269 = vshrl.u32 %v1268, 7
      %v1270 = vsub.s32 0, %v1269
      %v1271 = vrot.slane %v1266, %v1270
      %v1273 = vadd.f32 %v1250, %v1271
      %v1274 = vadd.f32 %v1251, %v1271
      %v1275 = vadd.f32 %v1252, %v1271
      %v1276 = vadd.f32 %v1253, %v1271
      %v1277 = vadd.f32 %v1254, %v1271
      %v1278 = vadd.f32 %v1255, %v1271
      %v1279 = vadd.f32 %v1256, %v1271
      %v1280 = vadd.f32 %v1257, %v1271
      %v1281 = vadd.f32 %v1258, %v1271
      %v1282 = vadd.f32 %v1259, %v1271
      %v1283 = vadd.f32 %v1260, %v1271
      %v1284 = vadd.f32 %v1261, %v1271
      %v1285 = vadd.f32 %v1262, %v1271
      %v1286 = vadd.f32 %v1263, %v1271
      %v1287 = vadd.f32 %v1264, %v1271
      %v1288 = vadd.f32 %v1265, %v1271
      %v1289 = vmax.f32 %v1273, 0.0
      %v1290 = vmax.f32 %v1274, 0.0
      %v1291 = vmax.f32 %v1275, 0.0
      %v1292 = vmax.f32 %v1276, 0.0
      %v1293 = vmax.f32 %v1277, 0.0
      %v1294 = vmax.f32 %v1278, 0.0
      %v1295 = vmax.f32 %v1279, 0.0
      %v1296 = vmax.f32 %v1280, 0.0
      %v1297 = vmax.f32 %v1281, 0.0
      %v1298 = vmax.f32 %v1282, 0.0
      %v1299 = vmax.f32 %v1283, 0.0
      %v1300 = vmax.f32 %v1284, 0.0
      %v1301 = vmax.f32 %v1285, 0.0
      %v1302 = vmax.f32 %v1286, 0.0
      %v1303 = vmax.f32 %v1287, 0.0
      %v1304 = vmax.f32 %v1288, 0.0
      %v1305 = vpack.c.bf16 %v1290, %v1289
      %v1306 = vpack.c.bf16 %v1292, %v1291
      %v1307 = vpack.c.bf16 %v1294, %v1293
      %v1308 = vpack.c.bf16 %v1296, %v1295
      %v1309 = vpack.c.bf16 %v1298, %v1297
      %v1310 = vpack.c.bf16 %v1300, %v1299
      %v1311 = vpack.c.bf16 %v1302, %v1301
      %v1312 = vpack.c.bf16 %v1304, %v1303
      %v1313 = vld [vmem:[%s5] sm:$0xf]
      %v1314 = vld [vmem:[%s6] sm:$0x1]
      %v1316 = vlaneseq
      %v1317 = vshrl.u32 %v1316, 7
      %v1318 = vsub.s32 0, %v1317
      %v1319 = vrot.slane %v1314, %v1318
      %v1322 = vsel %vm524, %v1305, 0
      %v1325 = vsel %vm524, %v1306, 0
      %v1328 = vsel %vm524, %v1307, 0
      %v1331 = vsel %vm524, %v1308, 0
      %v1334 = vsel %vm524, %v1309, 0
      %v1337 = vsel %vm524, %v1310, 0
      %v1340 = vsel %vm524, %v1311, 0
      %v1343 = vsel %vm524, %v1312, 0
      %vm1345 = vcmask 1043456
      %v1347 = vsel %vm1345, %v1313, 0
      %1349 = vmatprep.subr.bf16.mxu0 0
      %1350 = vmatpush1.bf16.msra.mxu0 %v1347
      %1351 = vmatprep.subr.bf16.mxu0 0
      %1352 = vmatpush1.bf16.msra.mxu0 0
      %1353 = vmatprep.subr.bf16.mxu0 0
      %1354 = vmatpush1.bf16.msra.mxu0 0
      %1355 = vmatprep.subr.bf16.mxu0 0
      %1356 = vmatpush1.bf16.msra.mxu0 0
      %1357 = vmatprep.subr.bf16.mxu0 0
      %1358 = vmatpush1.bf16.msra.mxu0 0
      %1359 = vmatprep.subr.bf16.mxu0 0
      %1360 = vmatpush1.bf16.msra.mxu0 0
      %1361 = vmatprep.subr.bf16.mxu0 0
      %1362 = vmatpush1.bf16.msra.mxu0 0
      %1363 = vmatprep.subr.bf16.mxu0 0
      %1364 = vmatpush1.bf16.msra.mxu0 0
      %1365 = vmatprep.subr.bf16.mxu0 0
      %1366 = vmatpush1.bf16.msra.mxu0 0
      %1367 = vmatprep.subr.bf16.mxu0 0
      %1368 = vmatpush1.bf16.msra.mxu0 0
      %1369 = vmatprep.subr.bf16.mxu0 0
      %1370 = vmatpush1.bf16.msra.mxu0 0
      %1371 = vmatprep.subr.bf16.mxu0 0
      %1372 = vmatpush1.bf16.msra.mxu0 0
      %1373 = vmatprep.subr.bf16.mxu0 0
      %1374 = vmatpush1.bf16.msra.mxu0 0
      %1375 = vmatprep.subr.bf16.mxu0 0
      %1376 = vmatpush1.bf16.msra.mxu0 0
      %1377 = vmatprep.subr.bf16.mxu0 0
      %1378 = vmatpush1.bf16.msra.mxu0 0
      %1379 = vmatprep.subr.bf16.mxu0 0
      %1380 = vmatpush1.bf16.msra.mxu0 0
      %1381 = vmatprep.mubr.bf16.mxu0 0
      %1382 = vmatmul.mubr.bf16.gmra.mrb[0].mxu0 %v1322
      %v1383 = vpop.f32.mrb[0].mxu0
      %v1384 = vadd.f32 %v1319, %v1383
      %v1385 = vpop.f32.mrb[0].mxu0
      %v1386 = vpop.f32.mrb[0].mxu0
      %v1387 = vadd.f32 %v1319, %v1386
      %v1388 = vpop.f32.mrb[0].mxu0
      %1389 = vmatprep.mubr.bf16.mxu0 0
      %1390 = vmatmul.mubr.bf16.gmra.mrb[0].mxu0 %v1325
      %v1391 = vpop.f32.mrb[0].mxu0
      %v1392 = vadd.f32 %v1319, %v1391
      %v1393 = vpop.f32.mrb[0].mxu0
      %v1394 = vpop.f32.mrb[0].mxu0
      %v1395 = vadd.f32 %v1319, %v1394
      %v1396 = vpop.f32.mrb[0].mxu0
      %1397 = vmatprep.mubr.bf16.mxu0 0
      %1398 = vmatmul.mubr.bf16.gmra.mrb[0].mxu0 %v1328
      %v1399 = vpop.f32.mrb[0].mxu0
      %v1400 = vadd.f32 %v1319, %v1399
      %v1401 = vpop.f32.mrb[0].mxu0
      %v1402 = vpop.f32.mrb[0].mxu0
      %v1403 = vadd.f32 %v1319, %v1402
      %v1404 = vpop.f32.mrb[0].mxu0
      %1405 = vmatprep.mubr.bf16.mxu0 0
      %1406 = vmatmul.mubr.bf16.gmra.mrb[0].mxu0 %v1331
      %v1407 = vpop.f32.mrb[0].mxu0
      %v1408 = vadd.f32 %v1319, %v1407
      %v1409 = vpop.f32.mrb[0].mxu0
      %v1410 = vpop.f32.mrb[0].mxu0
      %v1411 = vadd.f32 %v1319, %v1410
      %v1412 = vpop.f32.mrb[0].mxu0
      %1413 = vmatprep.mubr.bf16.mxu0 0
      %1414 = vmatmul.mubr.bf16.gmra.mrb[0].mxu0 %v1334
      %v1415 = vpop.f32.mrb[0].mxu0
      %v1416 = vadd.f32 %v1319, %v1415
      %v1417 = vpop.f32.mrb[0].mxu0
      %v1418 = vpop.f32.mrb[0].mxu0
      %v1419 = vadd.f32 %v1319, %v1418
      %v1420 = vpop.f32.mrb[0].mxu0
      %1421 = vmatprep.mubr.bf16.mxu0 0
      %1422 = vmatmul.mubr.bf16.gmra.mrb[0].mxu0 %v1337
      %v1423 = vpop.f32.mrb[0].mxu0
      %v1424 = vadd.f32 %v1319, %v1423
      %v1425 = vpop.f32.mrb[0].mxu0
      %v1426 = vpop.f32.mrb[0].mxu0
      %v1427 = vadd.f32 %v1319, %v1426
      %v1428 = vpop.f32.mrb[0].mxu0
      %1429 = vmatprep.mubr.bf16.mxu0 0
      %1430 = vmatmul.mubr.bf16.gmra.mrb[0].mxu0 %v1340
      %v1431 = vpop.f32.mrb[0].mxu0
      %v1432 = vadd.f32 %v1319, %v1431
      %v1433 = vpop.f32.mrb[0].mxu0
      %v1434 = vpop.f32.mrb[0].mxu0
      %v1435 = vadd.f32 %v1319, %v1434
      %v1436 = vpop.f32.mrb[0].mxu0
      %1437 = vmatprep.mubr.bf16.mxu0 0
      %1438 = vmatmul.mubr.bf16.gmra.mrb[0].mxu0 %v1343
      %v1439 = vpop.f32.mrb[0].mxu0
      %v1440 = vadd.f32 %v1319, %v1439
      %v1441 = vpop.f32.mrb[0].mxu0
      %v1442 = vpop.f32.mrb[0].mxu0
      %v1443 = vadd.f32 %v1319, %v1442
      %v1444 = vpop.f32.mrb[0].mxu0
      %1445 = vdwg.mxu0
      %1446 = vst [vmem:[%s445] sm:$0xff] %v1384
      %1447 = vst [vmem:[%s445 + $0x8] sm:$0xff] %v1387
      %1448 = vst [vmem:[%s445 + $0x10] sm:$0xff] %v1392
      %1449 = vst [vmem:[%s445 + $0x18] sm:$0xff] %v1395
      %1450 = vst [vmem:[%s445 + $0x20] sm:$0xff] %v1400
      %1451 = vst [vmem:[%s445 + $0x28] sm:$0xff] %v1403
      %1452 = vst [vmem:[%s445 + $0x30] sm:$0xff] %v1408
      %1453 = vst [vmem:[%s445 + $0x38] sm:$0xff] %v1411
      %1454 = vst [vmem:[%s445 + $0x40] sm:$0xff] %v1416
      %1455 = vst [vmem:[%s445 + $0x48] sm:$0xff] %v1419
      %1456 = vst [vmem:[%s445 + $0x50] sm:$0xff] %v1424
      %1457 = vst [vmem:[%s445 + $0x58] sm:$0xff] %v1427
      %1458 = vst [vmem:[%s445 + $0x60] sm:$0xff] %v1432
      %1459 = vst [vmem:[%s445 + $0x68] sm:$0xff] %v1435
      %1460 = vst [vmem:[%s445 + $0x70] sm:$0xff] %v1440
      %1461 = vst [vmem:[%s445 + $0x78] sm:$0xff] %v1443
      %s1462 = smul.u32 8, %s23
      %p1463 = scmp.lt.s32.totalorder %s22, 1
      %s1464 = scalar_select %p1463, %s22, 1
      %p1465 = scmp.lt.s32.totalorder %s1462, 15
      %s1466 = scalar_select %p1465, %s1462, 15
      %s1467 = smul.addr %s1466, 2
      %s1468 = smul.addr %s1464, 32
      %s1469 = sadd.s32 %s1467, %s1468
      %s1470 = smul.addr %s1469, 8
      %s1471 = scalar_lea.vmem %s7, %s1470
      // Predicated region
      $region49: #{prediction_module.1} parent=47 // pred_check
        %p1472 = pneg %p234
      $region50: #{prediction_module.1} parent=47 // pred_check_branch
        %1474 = sbr.rel (%p1472) target = $region52
      $region51: #{prediction_module.1} parent=47 // pred_region
        %s1475 = smul.u32 8, %s23
      $region52: #{prediction_module.1} parent=47 // pred_fallthru
        _
    $region48: #{prediction_module.1} parent=5 // pred_fallthru
      _
    %p1476 = scmp.le.s32.totalorder 2, %s13
    // Predicated region
    $region53: #{prediction_module.1} parent=5 // pred_check
      %p1477 = pneg %p1476
    $region54: #{prediction_module.1} parent=5 // pred_check_branch
      %1479 = sbr.rel (%p1477) target = $region56
    $region55: #{prediction_module.1} parent=5 // pred_region
      %s1480 = ssub.s32 %s13, 2
      // Predicated region
      $region57: #{prediction_module.1} parent=55 // pred_check
        %p1481 = pneg %p240
      $region58: #{prediction_module.1} parent=55 // pred_check_branch
        %1483 = sbr.rel (%p1481) target = $region60
      $region59: #{prediction_module.1} parent=55 // pred_region
        %s1484 = smul.u32 8, %s25
        %p1485 = scmp.lt.s32.totalorder %s24, 1
        %s1486 = scalar_select %p1485, %s24, 1
        %p1487 = scmp.lt.s32.totalorder %s1484, 15
        %s1488 = scalar_select %p1487, %s1484, 15
        %s1489 = smul.addr %s1488, 2
        %s1490 = smul.addr %s1486, 32
        %s1491 = sadd.s32 %s1489, %s1490
        %s1492 = smul.addr %s1491, 8
        %s1493 = scalar_lea.vmem %s7, %s1492
      $region60: #{prediction_module.1} parent=55 // pred_fallthru
        _
    $region56: #{prediction_module.1} parent=5 // pred_fallthru
      _
  $region6: #{prediction_module.1} parent=0 // loop_footer
    %s17 = sadd.s32 1, %s13
  $region7: #{prediction_module.1} parent=0 // loop_footer_branch
    %12 = sbr.rel target = $region3
  $region8: #{prediction_module.1} parent=0 // loop_exit
    _

</llo_original>
